<compile_context>
chip_gen: v7x
topology: tpu7x:2x2x1
jax: 0.10.0
libtpu: 0.0.40
codegen_flags: <defaults>
</compile_context>

<pallas_src>
import functools
import numpy as np
import jax
import jax.numpy as jnp
from jax.experimental import pallas as pl
from jax.experimental.pallas import tpu as pltpu


def _make_kernel(B, L, E, H):
    hd = E // H
    BL = B * L
    BH = B * H

    def kernel(x_ref, wqkv_ref, bqkv_ref, wo_ref, bo_ref, o_ref, attn_ref):
        # Single fused QKV projection: (B*L, E) @ (E, 3E).  Scale pre-folded into Q.
        qkv = jnp.dot(x_ref[...], wqkv_ref[...],
                      preferred_element_type=jnp.float32) + bqkv_ref[...]   # (BL, 3E)

        # Bulk head-major relayout: one static lane slice + reshape/transpose per
        # Q/K/V slab (instead of 3*H masked sub-128-lane slices in a head loop).
        def head_major(lo):
            blk = qkv[:, lo:lo + E]                       # (BL, E), static slice
            return blk.reshape(B, L, H, hd).transpose(0, 2, 1, 3).reshape(BH, L, hd)

        q = head_major(0)          # (B*H, L, hd)
        k = head_major(E)          # (B*H, L, hd)
        v = head_major(2 * E)      # (B*H, L, hd)

        # Scores for ALL heads in one batched matmul (K relayout handled once on
        # the stacked slab), then softmax once on the (B*H, L, L) stack.
        s = jnp.einsum("gld,gsd->gls", q, k,
                       preferred_element_type=jnp.float32)                  # (BH, L, L)
        m = jnp.max(s, axis=-1, keepdims=True)
        p = jnp.exp(s - m)
        denom = jnp.sum(p, axis=-1, keepdims=True)
        # Exact reciprocal: rows sum to 1 (approx EUP path was the dominant error).
        p = p * pl.reciprocal(denom, approx=False)

        # Context for all heads in one batched matmul.
        ctx = jnp.einsum("gls,gsd->gld", p, v,
                         preferred_element_type=jnp.float32)                # (BH, L, hd)

        # Re-concatenate heads on the lane axis and run ONE out_proj GEMM (K = E)
        # instead of H accumulating matmuls with K = hd.
        ctx2d = ctx.reshape(B, H, L, hd).transpose(0, 2, 1, 3).reshape(BL, E)
        out = jnp.dot(ctx2d, wo_ref[...],
                      preferred_element_type=jnp.float32) + bo_ref[...]
        o_ref[...] = out.astype(o_ref.dtype)

        # Head-averaged attention weights (PyTorch need_weights=True default),
        # emitted as a flattened (B*L, L) slab (leading-dim merge only).
        # TODO(synk): for v5e, a lane-dense (1, B*L*L) repack would avoid masked
        #             sub-128 vector stores; skipped here (tiny win, layout risk).
        attn = jnp.mean(p.reshape(B, H, L, L), axis=1)                      # (B, L, L)
        attn_ref[...] = attn.reshape(BL, L).astype(attn_ref.dtype)

    return kernel


def prepare_params(params, num_heads):
    """One-time offline weight algebra (call ONCE at init, not per forward step).

    Folds the cascaded projections (outer Linear -> MHA in_proj) into a single
    effective (E, 3E) QKV weight/bias, folds the 1/sqrt(hd) softmax scale into the
    Q columns, and pre-transposes / pre-reshapes out_proj.
    """
    E = params["wq"].shape[0]
    hd = E // num_heads
    scale = 1.0 / np.sqrt(hd)

    # PyTorch: y = x @ W.T + b.  Work with (in, out) transposed weights.
    inw_t = params["in_proj_w"].T                  # (E, 3E)
    inb = params["in_proj_b"]                      # (3E,)

    def fold(w, b, lo, hi, s=1.0):
        wi = inw_t[:, lo:hi]                       # (E, E), (in, out)
        w_eff = (w.T @ wi) * s                     # (E, E)
        b_eff = (b @ wi + inb[lo:hi]) * s          # (E,)
        return w_eff, b_eff

    wq_eff, bq_eff = fold(params["wq"], params["bq"], 0, E, scale)   # scale folded
    wk_eff, bk_eff = fold(params["wk"], params["bk"], E, 2 * E)
    wv_eff, bv_eff = fold(params["wv"], params["bv"], 2 * E, 3 * E)

    folded = {
        "w_qkv": jnp.concatenate([wq_eff, wk_eff, wv_eff], axis=1),        # (E, 3E)
        "b_qkv": jnp.concatenate([bq_eff, bk_eff, bv_eff]).reshape(1, 3 * E),
        "w_out": params["out_proj_w"].T,                                    # (E, E)
        "b_out": params["out_proj_b"].reshape(1, E),
    }
    return jax.block_until_ready(folded)


def multihead_forward(x, folded, num_heads):
    """x: (B, L, E) f32. folded: output of prepare_params()."""
    B, L, E = x.shape
    H = num_heads
    assert E % H == 0
    hd = E // H

    x2d = x.reshape(B * L, E)

    flops = (2 * (B * L) * E * (3 * E)        # fused QKV GEMM
             + 4 * B * H * L * L * hd          # scores + context
             + 2 * (B * L) * E * E)            # single out_proj GEMM
    bytes_accessed = 4 * (x2d.size + folded["w_qkv"].size + folded["b_qkv"].size
                          + folded["w_out"].size + folded["b_out"].size
                          + B * L * E + B * L * L)

    vmem = pl.BlockSpec(memory_space=pltpu.MemorySpace.VMEM)

    out2d, attn2d = pl.pallas_call(
        _make_kernel(B, L, E, H),
        out_shape=(
            jax.ShapeDtypeStruct((B * L, E), jnp.float32),
            jax.ShapeDtypeStruct((B * L, L), jnp.float32),
        ),
        in_specs=[vmem] * 5,
        out_specs=(vmem, vmem),
        cost_estimate=pl.CostEstimate(flops=flops,
                                      transcendentals=B * H * L * L,
                                      bytes_accessed=bytes_accessed),
    )(x2d, folded["w_qkv"], folded["b_qkv"], folded["w_out"], folded["b_out"])

    return out2d.reshape(B, L, E), attn2d.reshape(B, L, L)


def multihead_reference(x, params, num_heads):
    """Pure-JAX reference of the same forward pass (eval mode, unfused)."""
    B, L, E = x.shape
    H = num_heads
    hd = E // H
    q0 = x @ params["wq"].T + params["bq"]
    k0 = x @ params["wk"].T + params["bk"]
    v0 = x @ params["wv"].T + params["bv"]
    wi, bi = params["in_proj_w"], params["in_proj_b"]
    q = q0 @ wi[:E].T + bi[:E]
    k = k0 @ wi[E:2 * E].T + bi[E:2 * E]
    v = v0 @ wi[2 * E:].T + bi[2 * E:]
    qh = q.reshape(B, L, H, hd).transpose(0, 2, 1, 3)
    kh = k.reshape(B, L, H, hd).transpose(0, 2, 1, 3)
    vh = v.reshape(B, L, H, hd).transpose(0, 2, 1, 3)
    s = jnp.einsum("bhld,bhsd->bhls", qh, kh) / np.sqrt(hd)
    p = jax.nn.softmax(s, axis=-1)
    ctx = jnp.einsum("bhls,bhsd->bhld", p, vh).transpose(0, 2, 1, 3).reshape(B, L, E)
    out = ctx @ params["out_proj_w"].T + params["out_proj_b"]
    return out, p.mean(axis=1)


def init_params(key, emb_size):
    """Deterministic synthetic parameters with PyTorch shape conventions."""
    E = emb_size
    ks = jax.random.split(key, 10)
    f = lambda k, shape: (jax.random.normal(k, shape, jnp.float32) * 0.05)
    return {
        "wq": f(ks[0], (E, E)), "bq": f(ks[1], (E,)),
        "wk": f(ks[2], (E, E)), "bk": f(ks[3], (E,)),
        "wv": f(ks[4], (E, E)), "bv": f(ks[5], (E,)),
        "in_proj_w": f(ks[6], (3 * E, E)), "in_proj_b": f(ks[7], (3 * E,)),
        "out_proj_w": f(ks[8], (E, E)), "out_proj_b": f(ks[9], (E,)),
    }


if __name__ == "__main__":
    B, L, E, H = 2, 8, 32, 4

    key = jax.random.PRNGKey(0)
    kx, kp = jax.random.split(key)
    x = jax.random.normal(kx, (B, L, E), jnp.float32)
    params = init_params(kp, E)

    # Weight folding hoisted out of the per-call forward path (done once).
    folded = prepare_params(params, H)

    fwd = jax.jit(functools.partial(multihead_forward, num_heads=H))
    attn_out, attn_w = fwd(x, folded)
    jax.block_until_ready((attn_out, attn_w))

    ref_out, ref_w = multihead_reference(x, params, H)
    # 5e-4 tolerance: headroom for the folded-weight f32 rounding and different
    # reduction/accumulation order vs the unfused reference.
    np.testing.assert_allclose(np.asarray(attn_out), np.asarray(ref_out), atol=5e-4, rtol=5e-4)
    np.testing.assert_allclose(np.asarray(attn_w), np.asarray(ref_w), atol=5e-4, rtol=5e-4)

    print("KERNEL_OK")
</pallas_src>

<mosaic_0001>
module attributes {stable_mosaic.version = 11 : i64} {
  func.func @kernel(%arg0: memref<16x32xf32, #tpu.memory_space<vmem>>, %arg1: memref<32x96xf32, #tpu.memory_space<vmem>>, %arg2: memref<1x96xf32, #tpu.memory_space<vmem>>, %arg3: memref<32x32xf32, #tpu.memory_space<vmem>>, %arg4: memref<1x32xf32, #tpu.memory_space<vmem>>, %arg5: memref<16x32xf32, #tpu.memory_space<vmem>>, %arg6: memref<16x8xf32, #tpu.memory_space<vmem>>) attributes {dimension_semantics = [], scalar_prefetch = 0 : i64, scratch_operands = 0 : i64, tpu.core_type = #tpu.core_type<tc>} {
    %c0 = arith.constant 0 : index
    %c0_0 = arith.constant 0 : index
    %0 = vector.load %arg0[%c0, %c0_0] : memref<16x32xf32, #tpu.memory_space<vmem>>, vector<16x32xf32>
    %c0_1 = arith.constant 0 : index
    %c0_2 = arith.constant 0 : index
    %1 = vector.load %arg1[%c0_1, %c0_2] : memref<32x96xf32, #tpu.memory_space<vmem>>, vector<32x96xf32>
    %cst = arith.constant dense<0.000000e+00> : vector<16x96xf32>
    %2 = tpu.matmul %0, %1, %cst {dimension_numbers = #tpu.dot_dimension_numbers<[1], [0], [0], [1], [0, 0, 1, 1], [], []>} : vector<16x32xf32>, vector<32x96xf32>, vector<16x96xf32> -> vector<16x96xf32>
    %c0_3 = arith.constant 0 : index
    %c0_4 = arith.constant 0 : index
    %3 = vector.load %arg2[%c0_3, %c0_4] : memref<1x96xf32, #tpu.memory_space<vmem>>, vector<1x96xf32>
    %4 = vector.broadcast %3 : vector<1x96xf32> to vector<16x96xf32>
    %5 = arith.addf %2, %4 : vector<16x96xf32>
    %6 = vector.extract_strided_slice %5 {offsets = [0, 0], sizes = [16, 32], strides = [1, 1]} : vector<16x96xf32> to vector<16x32xf32>
    %7 = vector.shape_cast %6 : vector<16x32xf32> to vector<2x8x4x8xf32>
    %8 = tpu.transpose %7, [0, 2, 1, 3] : vector<2x8x4x8xf32> -> vector<2x4x8x8xf32>
    %9 = vector.shape_cast %8 : vector<2x4x8x8xf32> to vector<8x8x8xf32>
    %10 = vector.extract_strided_slice %5 {offsets = [0, 32], sizes = [16, 32], strides = [1, 1]} : vector<16x96xf32> to vector<16x32xf32>
    %11 = vector.shape_cast %10 : vector<16x32xf32> to vector<2x8x4x8xf32>
    %12 = tpu.transpose %11, [0, 2, 1, 3] : vector<2x8x4x8xf32> -> vector<2x4x8x8xf32>
    %13 = vector.shape_cast %12 : vector<2x4x8x8xf32> to vector<8x8x8xf32>
    %14 = vector.extract_strided_slice %5 {offsets = [0, 64], sizes = [16, 32], strides = [1, 1]} : vector<16x96xf32> to vector<16x32xf32>
    %15 = vector.shape_cast %14 : vector<16x32xf32> to vector<2x8x4x8xf32>
    %16 = tpu.transpose %15, [0, 2, 1, 3] : vector<2x8x4x8xf32> -> vector<2x4x8x8xf32>
    %17 = vector.shape_cast %16 : vector<2x4x8x8xf32> to vector<8x8x8xf32>
    "tpu.trace_start"() <{level = 10 : i32, message = "gld,gsd->gls"}> : () -> ()
    %cst_5 = arith.constant dense<0.000000e+00> : vector<8x8x8xf32>
    %18 = tpu.matmul %9, %13, %cst_5 {dimension_numbers = #tpu.dot_dimension_numbers<[2], [2], [1], [1], [0, 0, 0, 1, 1, 1], [0], [0]>} : vector<8x8x8xf32>, vector<8x8x8xf32>, vector<8x8x8xf32> -> vector<8x8x8xf32>
    "tpu.trace_stop"() : () -> ()
    %cst_6 = arith.constant dense<0xFF800000> : vector<8x8xf32>
    %19 = vector.multi_reduction <maximumf>, %18, %cst_6 [2] : vector<8x8x8xf32> to vector<8x8xf32>
    %20 = vector.shape_cast %19 : vector<8x8xf32> to vector<8x8x1xf32>
    %21 = vector.broadcast %20 : vector<8x8x1xf32> to vector<8x8x8xf32>
    %22 = arith.subf %18, %21 : vector<8x8x8xf32>
    %23 = math.exp %22 : vector<8x8x8xf32>
    %cst_7 = arith.constant dense<0.000000e+00> : vector<8x8xf32>
    %24 = vector.multi_reduction <add>, %23, %cst_7 [2] : vector<8x8x8xf32> to vector<8x8xf32>
    %25 = vector.shape_cast %24 : vector<8x8xf32> to vector<8x8x1xf32>
    %26 = tpu.reciprocal %25 : vector<8x8x1xf32> -> vector<8x8x1xf32>
    %27 = vector.broadcast %26 : vector<8x8x1xf32> to vector<8x8x8xf32>
    %28 = arith.mulf %23, %27 : vector<8x8x8xf32>
    "tpu.trace_start"() <{level = 10 : i32, message = "gls,gsd->gld"}> : () -> ()
    %cst_8 = arith.constant dense<0.000000e+00> : vector<8x8x8xf32>
    %29 = tpu.matmul %28, %17, %cst_8 {dimension_numbers = #tpu.dot_dimension_numbers<[2], [1], [1], [2], [0, 0, 0, 1, 1, 2], [0], [0]>} : vector<8x8x8xf32>, vector<8x8x8xf32>, vector<8x8x8xf32> -> vector<8x8x8xf32>
    "tpu.trace_stop"() : () -> ()
    %30 = vector.shape_cast %29 : vector<8x8x8xf32> to vector<2x4x8x8xf32>
    %31 = tpu.transpose %30, [0, 2, 1, 3] : vector<2x4x8x8xf32> -> vector<2x8x4x8xf32>
    %32 = vector.shape_cast %31 : vector<2x8x4x8xf32> to vector<16x32xf32>
    %c0_9 = arith.constant 0 : index
    %c0_10 = arith.constant 0 : index
    %33 = vector.load %arg3[%c0_9, %c0_10] : memref<32x32xf32, #tpu.memory_space<vmem>>, vector<32x32xf32>
    %cst_11 = arith.constant dense<0.000000e+00> : vector<16x32xf32>
    %34 = tpu.matmul %32, %33, %cst_11 {dimension_numbers = #tpu.dot_dimension_numbers<[1], [0], [0], [1], [0, 0, 1, 1], [], []>} : vector<16x32xf32>, vector<32x32xf32>, vector<16x32xf32> -> vector<16x32xf32>
    %c0_12 = arith.constant 0 : index
    %c0_13 = arith.constant 0 : index
    %35 = vector.load %arg4[%c0_12, %c0_13] : memref<1x32xf32, #tpu.memory_space<vmem>>, vector<1x32xf32>
    %36 = vector.broadcast %35 : vector<1x32xf32> to vector<16x32xf32>
    %37 = arith.addf %34, %36 : vector<16x32xf32>
    %c0_14 = arith.constant 0 : index
    %c0_15 = arith.constant 0 : index
    %38 = vector.load %arg5[%c0_14, %c0_15] : memref<16x32xf32, #tpu.memory_space<vmem>>, vector<16x32xf32>
    tpu.vector_store %arg5[%c0_14, %c0_15], %37 {strides = array<i32>} : memref<16x32xf32, #tpu.memory_space<vmem>>, vector<16x32xf32>,
    %39 = vector.shape_cast %28 : vector<8x8x8xf32> to vector<2x4x8x8xf32>
    %cst_16 = arith.constant dense<0.000000e+00> : vector<2x8x8xf32>
    %40 = vector.multi_reduction <add>, %39, %cst_16 [1] : vector<2x4x8x8xf32> to vector<2x8x8xf32>
    %cst_17 = arith.constant 4.000000e+00 : f32
    %41 = vector.broadcast %cst_17 : f32 to vector<2x8x8xf32>
    %42 = arith.divf %40, %41 : vector<2x8x8xf32>
    %43 = vector.shape_cast %42 : vector<2x8x8xf32> to vector<16x8xf32>
    %c0_18 = arith.constant 0 : index
    %c0_19 = arith.constant 0 : index
    %44 = vector.load %arg6[%c0_18, %c0_19] : memref<16x8xf32, #tpu.memory_space<vmem>>, vector<16x8xf32>
    tpu.vector_store %arg6[%c0_18, %c0_19], %43 {strides = array<i32>} : memref<16x8xf32, #tpu.memory_space<vmem>>, vector<16x8xf32>,
    return
  }
}

</mosaic_0001>

<llo_original>
// kernel: multihead_forward.1
$region0: #{multihead_forward.1}
  #allocation0 [shape = 'u32[]', space=smem, size = 0x4, offset = 0x4, fixed_abs, tag = 'smem constant byte address 0x4 - core index']
  #allocation1 [shape = 'u32[144,128]{1,0:T(1,128)}', space=vmem, size = 0x12000, scoped, tag = 'internal scratch']
  %s0 = inlined_call_operand.hbm [shape: f32[16,32], index: 0, kind: input, shape index: {}]
  %s1 = inlined_call_operand.hbm [shape: f32[32,96], index: 1, kind: input, shape index: {}]
  %s2 = inlined_call_operand.vmem [shape: f32[1,96], index: 2, kind: input, shape index: {}]
  %s3 = inlined_call_operand.hbm [shape: f32[32,32], index: 3, kind: input, shape index: {}]
  %s4 = inlined_call_operand.vmem [shape: f32[1,32], index: 4, kind: input, shape index: {}]
  %s5 = inlined_call_operand.hbm [shape: f32[16,32], index: 5, kind: output, shape index: {0}]
  %s6 = inlined_call_operand.hbm [shape: f32[16,8], index: 6, kind: output, shape index: {1}]
  %7 = xla_tuple %s5, %s6
  %s8 = sld [smem:[#allocation0]]
  $region50: #{multihead_forward.1} parent=0
    _
  %s10 = ssub.s32 1, %s8
  %s11 = scalar_select 0, %s10, %s8
  $region1: #{multihead_forward.1} parent=0
    #allocation2 [shape = 'u8[8192]{0}', space=vmem, size = 0x2000, scoped, tag = 'input window, operand 0, single buffered']
    #allocation3 [shape = 's32[1]{0}', space=sflag, size = 0x4, scoped, tag = 'scoped memory for multihead_forward.1']
    #allocation4 [shape = 's32[1]{0}', space=sflag, size = 0x4, scoped, tag = 'scoped memory for multihead_forward.1']
    #allocation5 [shape = 'u8[16384]{0}', space=vmem, size = 0x4000, scoped, tag = 'input window, operand 1, single buffered']
    #allocation6 [shape = 's32[1]{0}', space=sflag, size = 0x4, scoped, tag = 'scoped memory for multihead_forward.1']
    #allocation7 [shape = 'u8[16384]{0}', space=vmem, size = 0x4000, scoped, tag = 'input window, operand 3, single buffered']
    #allocation8 [shape = 'u8[8192]{0}', space=vmem, size = 0x2000, scoped, tag = 'output window, operand 0, single buffered']
    #allocation9 [shape = 'u8[8192]{0}', space=vmem, size = 0x2000, scoped, tag = 'output window, operand 1, single buffered']
    #allocation10 [shape = 's32[1]{0}', space=sflag, size = 0x4, scoped, tag = 'scoped memory for multihead_forward.1']
    %12 = vsyncpa [#allocation3], 0
    %13 = vsyncpa [#allocation6], 0
    %14 = vsyncpa [#allocation4], 0
    %15 = vsyncpa [#allocation10], 0
    // Predicated region
    $region2: #{multihead_forward.1} parent=1 // pred_check
      _
    $region3: #{multihead_forward.1} parent=1 // pred_check_branch
      %17 = sbr.rel (0) target = $region5
    $region4: #{multihead_forward.1} parent=1 // pred_region
      %s19 = ssub.s32 256, 256
      %20 = vsyncadd [#allocation3], %s19
      %s21 = sshll.u32 [#allocation2], 4
      %s22 = int_to_ptr.vmem [resolvable:$true] %s21
      %27 = dma.hbm_to_vmem [thread:$0]  %s0, 256, %s22, [#allocation3], 128, 128, 8
    $region5: #{multihead_forward.1} parent=1 // pred_fallthru
      _
    // Predicated region
    $region6: #{multihead_forward.1} parent=1 // pred_check
      _
    $region7: #{multihead_forward.1} parent=1 // pred_check_branch
      %29 = sbr.rel (0) target = $region9
    $region8: #{multihead_forward.1} parent=1 // pred_region
      %s31 = ssub.s32 512, 512
      %32 = vsyncadd [#allocation6], %s31
      %s33 = sshll.u32 [#allocation5], 4
      %s34 = int_to_ptr.vmem [resolvable:$true] %s33
      %39 = dma.hbm_to_vmem [thread:$0]  %s1, 512, %s34, [#allocation6], 128, 128, 8
    $region9: #{multihead_forward.1} parent=1 // pred_fallthru
      _
    // Predicated region
    $region10: #{multihead_forward.1} parent=1 // pred_check
      _
    $region11: #{multihead_forward.1} parent=1 // pred_check_branch
      %41 = sbr.rel (0) target = $region13
    $region12: #{multihead_forward.1} parent=1 // pred_region
      _
    $region13: #{multihead_forward.1} parent=1 // pred_fallthru
      _
    // Predicated region
    $region14: #{multihead_forward.1} parent=1 // pred_check
      _
    $region15: #{multihead_forward.1} parent=1 // pred_check_branch
      %43 = sbr.rel (0) target = $region17
    $region16: #{multihead_forward.1} parent=1 // pred_region
      %s45 = ssub.s32 512, 512
      %46 = vsyncadd [#allocation6], %s45
      %s47 = sshll.u32 [#allocation7], 4
      %s48 = int_to_ptr.vmem [resolvable:$true] %s47
      %53 = dma.hbm_to_vmem [thread:$0]  %s3, 512, %s48, [#allocation6], 128, 128, 8
    $region17: #{multihead_forward.1} parent=1 // pred_fallthru
      _
    // Predicated region
    $region18: #{multihead_forward.1} parent=1 // pred_check
      _
    $region19: #{multihead_forward.1} parent=1 // pred_check_branch
      %55 = sbr.rel (0) target = $region21
    $region20: #{multihead_forward.1} parent=1 // pred_region
      _
    $region21: #{multihead_forward.1} parent=1 // pred_fallthru
      _
    // Predicated region
    $region22: #{multihead_forward.1} parent=1 // pred_check
      _
    $region23: #{multihead_forward.1} parent=1 // pred_check_branch
      %57 = sbr.rel (0) target = $region25
    $region24: #{multihead_forward.1} parent=1 // pred_region
      %58 = dma.done [#allocation3], 256
    $region25: #{multihead_forward.1} parent=1 // pred_fallthru
      _
    // Predicated region
    $region26: #{multihead_forward.1} parent=1 // pred_check
      _
    $region27: #{multihead_forward.1} parent=1 // pred_check_branch
      %60 = sbr.rel (0) target = $region29
    $region28: #{multihead_forward.1} parent=1 // pred_region
      %61 = dma.done [#allocation6], 512
    $region29: #{multihead_forward.1} parent=1 // pred_fallthru
      _
    // Predicated region
    $region30: #{multihead_forward.1} parent=1 // pred_check
      _
    $region31: #{multihead_forward.1} parent=1 // pred_check_branch
      %63 = sbr.rel (0) target = $region33
    $region32: #{multihead_forward.1} parent=1 // pred_region
      %64 = dma.done [#allocation6], 512
    $region33: #{multihead_forward.1} parent=1 // pred_fallthru
      _
    %v65 = vld [vmem:[#allocation2] sm:$0xff]
    %v66 = vld [vmem:[#allocation2 + $0x8] sm:$0xff]
    %v67 = vld [vmem:[#allocation5] sm:$0xff]
    %v68 = vld [vmem:[#allocation5 + $0x8] sm:$0xff]
    %v69 = vld [vmem:[#allocation5 + $0x10] sm:$0xff]
    %v70 = vld [vmem:[#allocation5 + $0x18] sm:$0xff]
    %v71 = vld [vmem:[%s2] sm:$0x1]
    %v73 = vlaneseq
    %v74 = vshrl.u32 %v73, 7
    %v75 = vsub.s32 0, %v74
    %v76 = vrot.slane %v71, %v75
    %vm78 = vcmask 261120
    %v80 = vsel %vm78, %v65, 0
    %v83 = vsel %vm78, %v66, 0
    %85 = vmatprep.subr.mxu0 0.0
    %86 = vmatpush1.msra.mxu0 %v67
    %87 = vmatprep.subr.mxu0 0.0
    %88 = vmatpush1.msra.mxu0 %v68
    %89 = vmatprep.subr.mxu0 0.0
    %90 = vmatpush1.msra.mxu0 %v69
    %91 = vmatprep.subr.mxu0 0.0
    %92 = vmatpush1.msra.mxu0 %v70
    %93 = vmatprep.subr.mxu0 0.0
    %94 = vmatpush1.msra.mxu0 0.0
    %95 = vmatprep.subr.mxu0 0.0
    %96 = vmatpush1.msra.mxu0 0.0
    %97 = vmatprep.subr.mxu0 0.0
    %98 = vmatpush1.msra.mxu0 0.0
    %99 = vmatprep.subr.mxu0 0.0
    %100 = vmatpush1.msra.mxu0 0.0
    %101 = vmatprep.subr.mxu0 0.0
    %102 = vmatpush1.msra.mxu0 0.0
    %103 = vmatprep.subr.mxu0 0.0
    %104 = vmatpush1.msra.mxu0 0.0
    %105 = vmatprep.subr.mxu0 0.0
    %106 = vmatpush1.msra.mxu0 0.0
    %107 = vmatprep.subr.mxu0 0.0
    %108 = vmatpush1.msra.mxu0 0.0
    %109 = vmatprep.subr.mxu0 0.0
    %110 = vmatpush1.msra.mxu0 0.0
    %111 = vmatprep.subr.mxu0 0.0
    %112 = vmatpush1.msra.mxu0 0.0
    %113 = vmatprep.subr.mxu0 0.0
    %114 = vmatpush1.msra.mxu0 0.0
    %115 = vmatprep.subr.mxu0 0.0
    %116 = vmatpush1.msra.mxu0 0.0
    %117 = vmatprep.subr.mxu0 0.0
    %118 = vmatpush1.msra.mxu0 0.0
    %119 = vmatprep.subr.mxu0 0.0
    %120 = vmatpush1.msra.mxu0 0.0
    %121 = vmatprep.subr.mxu0 0.0
    %122 = vmatpush1.msra.mxu0 0.0
    %123 = vmatprep.subr.mxu0 0.0
    %124 = vmatpush1.msra.mxu0 0.0
    %125 = vmatprep.subr.mxu0 0.0
    %126 = vmatpush1.msra.mxu0 0.0
    %127 = vmatprep.subr.mxu0 0.0
    %128 = vmatpush1.msra.mxu0 0.0
    %129 = vmatprep.subr.mxu0 0.0
    %130 = vmatpush1.msra.mxu0 0.0
    %131 = vmatprep.subr.mxu0 0.0
    %132 = vmatpush1.msra.mxu0 0.0
    %133 = vmatprep.subr.mxu0 0.0
    %134 = vmatpush1.msra.mxu0 0.0
    %135 = vmatprep.subr.mxu0 0.0
    %136 = vmatpush1.msra.mxu0 0.0
    %137 = vmatprep.subr.mxu0 0.0
    %138 = vmatpush1.msra.mxu0 0.0
    %139 = vmatprep.subr.mxu0 0.0
    %140 = vmatpush1.msra.mxu0 0.0
    %141 = vmatprep.subr.mxu0 0.0
    %142 = vmatpush1.msra.mxu0 0.0
    %143 = vmatprep.subr.mxu0 0.0
    %144 = vmatpush1.msra.mxu0 0.0
    %145 = vmatprep.subr.mxu0 0.0
    %146 = vmatpush1.msra.mxu0 0.0
    %147 = vmatprep.subr.mxu0 0.0
    %148 = vmatpush1.msra.mxu0 0.0
    %149 = vmatprep.mubr.f32.mxu0 0.0
    %150 = vmatmul.mubr.f32.gmra.mrb[0].mxu0 %v80
    %v151 = vpop.f32.mrb[0].mxu0
    %v152 = vadd.f32 %v76, %v151
    %v153 = vpop.f32.mrb[0].mxu0
    %154 = vmatprep.mubr.f32.mxu0 0.0
    %155 = vmatmul.mubr.f32.gmra.mrb[0].mxu0 %v83
    %v156 = vpop.f32.mrb[0].mxu0
    %v157 = vadd.f32 %v76, %v156
    %v158 = vpop.f32.mrb[0].mxu0
    %159 = vdwg.mxu0
    %162 = vrot.lane.b32.xlu0 %v152, 120
    %v163 = vpop.permute.xlu0 %162
    %164 = vrot.lane.b32.xlu0 %v157, 120
    %v165 = vpop.permute.xlu0 %164
    %168 = vrot.lane.b32.xlu0 %v152, 112
    %v169 = vpop.permute.xlu0 %168
    %170 = vrot.lane.b32.xlu0 %v157, 112
    %v171 = vpop.permute.xlu0 %170
    %174 = vrot.lane.b32.xlu0 %v152, 104
    %v175 = vpop.permute.xlu0 %174
    %176 = vrot.lane.b32.xlu0 %v157, 104
    %v177 = vpop.permute.xlu0 %176
    %v180 = vcombine.low %v152, %v169
    %v181 = vcombine.high %v152, %v169
    %v183 = vunpack.c.l.s4 1983009808
    %v184 = vunpack.c.0.s8 %v183
    %v185 = vlaneseq
    %v186 = vshrl.u32 %v185, 7
    %v187 = vsub.s32 %v184, %v186
    %v188 = vrot.slane %v180, %v187
    %v190 = vunpack.c.l.s4 1983009808
    %v191 = vunpack.c.0.s8 %v190
    %v192 = vlaneseq
    %v193 = vshrl.u32 %v192, 7
    %v194 = vsub.s32 %v191, %v193
    %v195 = vrot.slane %v181, %v194
    %v196 = vcombine.low %v163, %v175
    %v197 = vcombine.high %v163, %v175
    %v199 = vunpack.c.l.s4 1983009808
    %v200 = vunpack.c.0.s8 %v199
    %v201 = vlaneseq
    %v202 = vshrl.u32 %v201, 7
    %v203 = vsub.s32 %v200, %v202
    %v204 = vrot.slane %v196, %v203
    %v206 = vunpack.c.l.s4 1983009808
    %v207 = vunpack.c.0.s8 %v206
    %v208 = vlaneseq
    %v209 = vshrl.u32 %v208, 7
    %v210 = vsub.s32 %v207, %v209
    %v211 = vrot.slane %v197, %v210
    %v212 = vcombine.low %v188, %v204
    %v213 = vcombine.high %v188, %v204
    %v215 = vunpack.c.l.s4 1934713408
    %v216 = vunpack.c.0.s8 %v215
    %v217 = vlaneseq
    %v218 = vshrl.u32 %v217, 7
    %v219 = vsub.s32 %v216, %v218
    %v220 = vrot.slane %v212, %v219
    %v222 = vunpack.c.l.s4 1934713408
    %v223 = vunpack.c.0.s8 %v222
    %v224 = vlaneseq
    %v225 = vshrl.u32 %v224, 7
    %v226 = vsub.s32 %v223, %v225
    %v227 = vrot.slane %v213, %v226
    %v228 = vcombine.low %v195, %v211
    %v229 = vcombine.high %v195, %v211
    %v231 = vunpack.c.l.s4 1934713408
    %v232 = vunpack.c.0.s8 %v231
    %v233 = vlaneseq
    %v234 = vshrl.u32 %v233, 7
    %v235 = vsub.s32 %v232, %v234
    %v236 = vrot.slane %v228, %v235
    %v238 = vunpack.c.l.s4 1934713408
    %v239 = vunpack.c.0.s8 %v238
    %v240 = vlaneseq
    %v241 = vshrl.u32 %v240, 7
    %v242 = vsub.s32 %v239, %v241
    %v243 = vrot.slane %v229, %v242
    %v244 = vcombine.high %v220, 0.0
    %v245 = vcombine.high %v227, 0.0
    %v246 = vcombine.high %v236, 0.0
    %v247 = vcombine.high %v243, 0.0
    %v248 = vcombine.low %v157, %v171
    %v249 = vcombine.high %v157, %v171
    %v251 = vunpack.c.l.s4 1983009808
    %v252 = vunpack.c.0.s8 %v251
    %v253 = vlaneseq
    %v254 = vshrl.u32 %v253, 7
    %v255 = vsub.s32 %v252, %v254
    %v256 = vrot.slane %v248, %v255
    %v258 = vunpack.c.l.s4 1983009808
    %v259 = vunpack.c.0.s8 %v258
    %v260 = vlaneseq
    %v261 = vshrl.u32 %v260, 7
    %v262 = vsub.s32 %v259, %v261
    %v263 = vrot.slane %v249, %v262
    %v264 = vcombine.low %v165, %v177
    %v265 = vcombine.high %v165, %v177
    %v267 = vunpack.c.l.s4 1983009808
    %v268 = vunpack.c.0.s8 %v267
    %v269 = vlaneseq
    %v270 = vshrl.u32 %v269, 7
    %v271 = vsub.s32 %v268, %v270
    %v272 = vrot.slane %v264, %v271
    %v274 = vunpack.c.l.s4 1983009808
    %v275 = vunpack.c.0.s8 %v274
    %v276 = vlaneseq
    %v277 = vshrl.u32 %v276, 7
    %v278 = vsub.s32 %v275, %v277
    %v279 = vrot.slane %v265, %v278
    %v280 = vcombine.low %v256, %v272
    %v281 = vcombine.high %v256, %v272
    %v283 = vunpack.c.l.s4 1934713408
    %v284 = vunpack.c.0.s8 %v283
    %v285 = vlaneseq
    %v286 = vshrl.u32 %v285, 7
    %v287 = vsub.s32 %v284, %v286
    %v288 = vrot.slane %v280, %v287
    %v290 = vunpack.c.l.s4 1934713408
    %v291 = vunpack.c.0.s8 %v290
    %v292 = vlaneseq
    %v293 = vshrl.u32 %v292, 7
    %v294 = vsub.s32 %v291, %v293
    %v295 = vrot.slane %v281, %v294
    %v296 = vcombine.low %v263, %v279
    %v297 = vcombine.high %v263, %v279
    %v299 = vunpack.c.l.s4 1934713408
    %v300 = vunpack.c.0.s8 %v299
    %v301 = vlaneseq
    %v302 = vshrl.u32 %v301, 7
    %v303 = vsub.s32 %v300, %v302
    %v304 = vrot.slane %v296, %v303
    %v306 = vunpack.c.l.s4 1934713408
    %v307 = vunpack.c.0.s8 %v306
    %v308 = vlaneseq
    %v309 = vshrl.u32 %v308, 7
    %v310 = vsub.s32 %v307, %v309
    %v311 = vrot.slane %v297, %v310
    %v312 = vcombine.high %v288, 0.0
    %v313 = vcombine.high %v295, 0.0
    %v314 = vcombine.high %v304, 0.0
    %v315 = vcombine.high %v311, 0.0
    %v316 = vcombine.low %v220, %v227
    %v318 = vunpack.c.l.s4 1983009808
    %v319 = vunpack.c.0.s8 %v318
    %v320 = vlaneseq
    %v321 = vshrl.u32 %v320, 7
    %v322 = vsub.s32 %v319, %v321
    %v323 = vrot.slane %v316, %v322
    %v324 = vcombine.low %v244, %v245
    %v326 = vunpack.c.l.s4 1983009808
    %v327 = vunpack.c.0.s8 %v326
    %v328 = vlaneseq
    %v329 = vshrl.u32 %v328, 7
    %v330 = vsub.s32 %v327, %v329
    %v331 = vrot.slane %v324, %v330
    %v332 = vcombine.low %v236, %v243
    %v334 = vunpack.c.l.s4 1983009808
    %v335 = vunpack.c.0.s8 %v334
    %v336 = vlaneseq
    %v337 = vshrl.u32 %v336, 7
    %v338 = vsub.s32 %v335, %v337
    %v339 = vrot.slane %v332, %v338
    %v340 = vcombine.low %v246, %v247
    %v342 = vunpack.c.l.s4 1983009808
    %v343 = vunpack.c.0.s8 %v342
    %v344 = vlaneseq
    %v345 = vshrl.u32 %v344, 7
    %v346 = vsub.s32 %v343, %v345
    %v347 = vrot.slane %v340, %v346
    %v348 = vcombine.low %v323, %v331
    %v349 = vcombine.high %v323, %v331
    %v351 = vunpack.c.l.s4 1934713408
    %v352 = vunpack.c.0.s8 %v351
    %v353 = vlaneseq
    %v354 = vshrl.u32 %v353, 7
    %v355 = vsub.s32 %v352, %v354
    %v356 = vrot.slane %v348, %v355
    %v358 = vunpack.c.l.s4 1934713408
    %v359 = vunpack.c.0.s8 %v358
    %v360 = vlaneseq
    %v361 = vshrl.u32 %v360, 7
    %v362 = vsub.s32 %v359, %v361
    %v363 = vrot.slane %v349, %v362
    %v364 = vcombine.low %v339, %v347
    %v365 = vcombine.high %v339, %v347
    %v367 = vunpack.c.l.s4 1934713408
    %v368 = vunpack.c.0.s8 %v367
    %v369 = vlaneseq
    %v370 = vshrl.u32 %v369, 7
    %v371 = vsub.s32 %v368, %v370
    %v372 = vrot.slane %v364, %v371
    %v374 = vunpack.c.l.s4 1934713408
    %v375 = vunpack.c.0.s8 %v374
    %v376 = vlaneseq
    %v377 = vshrl.u32 %v376, 7
    %v378 = vsub.s32 %v375, %v377
    %v379 = vrot.slane %v365, %v378
    %v380 = vcombine.low %v356, %v372
    %v381 = vcombine.high %v356, %v372
    %v382 = vcombine.low %v363, %v379
    %v383 = vcombine.high %v363, %v379
    %v384 = vcombine.low %v288, %v295
    %v386 = vunpack.c.l.s4 1983009808
    %v387 = vunpack.c.0.s8 %v386
    %v388 = vlaneseq
    %v389 = vshrl.u32 %v388, 7
    %v390 = vsub.s32 %v387, %v389
    %v391 = vrot.slane %v384, %v390
    %v392 = vcombine.low %v312, %v313
    %v394 = vunpack.c.l.s4 1983009808
    %v395 = vunpack.c.0.s8 %v394
    %v396 = vlaneseq
    %v397 = vshrl.u32 %v396, 7
    %v398 = vsub.s32 %v395, %v397
    %v399 = vrot.slane %v392, %v398
    %v400 = vcombine.low %v304, %v311
    %v402 = vunpack.c.l.s4 1983009808
    %v403 = vunpack.c.0.s8 %v402
    %v404 = vlaneseq
    %v405 = vshrl.u32 %v404, 7
    %v406 = vsub.s32 %v403, %v405
    %v407 = vrot.slane %v400, %v406
    %v408 = vcombine.low %v314, %v315
    %v410 = vunpack.c.l.s4 1983009808
    %v411 = vunpack.c.0.s8 %v410
    %v412 = vlaneseq
    %v413 = vshrl.u32 %v412, 7
    %v414 = vsub.s32 %v411, %v413
    %v415 = vrot.slane %v408, %v414
    %v416 = vcombine.low %v391, %v399
    %v417 = vcombine.high %v391, %v399
    %v419 = vunpack.c.l.s4 1934713408
    %v420 = vunpack.c.0.s8 %v419
    %v421 = vlaneseq
    %v422 = vshrl.u32 %v421, 7
    %v423 = vsub.s32 %v420, %v422
    %v424 = vrot.slane %v416, %v423
    %v426 = vunpack.c.l.s4 1934713408
    %v427 = vunpack.c.0.s8 %v426
    %v428 = vlaneseq
    %v429 = vshrl.u32 %v428, 7
    %v430 = vsub.s32 %v427, %v429
    %v431 = vrot.slane %v417, %v430
    %v432 = vcombine.low %v407, %v415
    %v433 = vcombine.high %v407, %v415
    %v435 = vunpack.c.l.s4 1934713408
    %v436 = vunpack.c.0.s8 %v435
    %v437 = vlaneseq
    %v438 = vshrl.u32 %v437, 7
    %v439 = vsub.s32 %v436, %v438
    %v440 = vrot.slane %v432, %v439
    %v442 = vunpack.c.l.s4 1934713408
    %v443 = vunpack.c.0.s8 %v442
    %v444 = vlaneseq
    %v445 = vshrl.u32 %v444, 7
    %v446 = vsub.s32 %v443, %v445
    %v447 = vrot.slane %v433, %v446
    %v448 = vcombine.low %v424, %v440
    %v449 = vcombine.high %v424, %v440
    %v450 = vcombine.low %v431, %v447
    %v451 = vcombine.high %v431, %v447
    %452 = vrot.lane.b32.xlu0 %v152, 96
    %v453 = vpop.permute.xlu0 %452
    %454 = vrot.lane.b32.xlu0 %v157, 96
    %v455 = vpop.permute.xlu0 %454
    %456 = vrot.lane.b32.xlu0 %v163, 96
    %v457 = vpop.permute.xlu0 %456
    %458 = vrot.lane.b32.xlu0 %v165, 96
    %v459 = vpop.permute.xlu0 %458
    %460 = vrot.lane.b32.xlu0 %v169, 96
    %v461 = vpop.permute.xlu0 %460
    %462 = vrot.lane.b32.xlu0 %v171, 96
    %v463 = vpop.permute.xlu0 %462
    %464 = vrot.lane.b32.xlu0 %v175, 96
    %v465 = vpop.permute.xlu0 %464
    %466 = vrot.lane.b32.xlu0 %v177, 96
    %v467 = vpop.permute.xlu0 %466
    %v476 = vcombine.low %v453, %v461
    %v477 = vcombine.high %v453, %v461
    %v479 = vunpack.c.l.s4 1983009808
    %v480 = vunpack.c.0.s8 %v479
    %v481 = vlaneseq
    %v482 = vshrl.u32 %v481, 7
    %v483 = vsub.s32 %v480, %v482
    %v484 = vrot.slane %v476, %v483
    %v486 = vunpack.c.l.s4 1983009808
    %v487 = vunpack.c.0.s8 %v486
    %v488 = vlaneseq
    %v489 = vshrl.u32 %v488, 7
    %v490 = vsub.s32 %v487, %v489
    %v491 = vrot.slane %v477, %v490
    %v492 = vcombine.low %v457, %v465
    %v493 = vcombine.high %v457, %v465
    %v495 = vunpack.c.l.s4 1983009808
    %v496 = vunpack.c.0.s8 %v495
    %v497 = vlaneseq
    %v498 = vshrl.u32 %v497, 7
    %v499 = vsub.s32 %v496, %v498
    %v500 = vrot.slane %v492, %v499
    %v502 = vunpack.c.l.s4 1983009808
    %v503 = vunpack.c.0.s8 %v502
    %v504 = vlaneseq
    %v505 = vshrl.u32 %v504, 7
    %v506 = vsub.s32 %v503, %v505
    %v507 = vrot.slane %v493, %v506
    %v508 = vcombine.low %v484, %v500
    %v509 = vcombine.high %v484, %v500
    %v511 = vunpack.c.l.s4 1934713408
    %v512 = vunpack.c.0.s8 %v511
    %v513 = vlaneseq
    %v514 = vshrl.u32 %v513, 7
    %v515 = vsub.s32 %v512, %v514
    %v516 = vrot.slane %v508, %v515
    %v518 = vunpack.c.l.s4 1934713408
    %v519 = vunpack.c.0.s8 %v518
    %v520 = vlaneseq
    %v521 = vshrl.u32 %v520, 7
    %v522 = vsub.s32 %v519, %v521
    %v523 = vrot.slane %v509, %v522
    %v524 = vcombine.low %v491, %v507
    %v525 = vcombine.high %v491, %v507
    %v527 = vunpack.c.l.s4 1934713408
    %v528 = vunpack.c.0.s8 %v527
    %v529 = vlaneseq
    %v530 = vshrl.u32 %v529, 7
    %v531 = vsub.s32 %v528, %v530
    %v532 = vrot.slane %v524, %v531
    %v534 = vunpack.c.l.s4 1934713408
    %v535 = vunpack.c.0.s8 %v534
    %v536 = vlaneseq
    %v537 = vshrl.u32 %v536, 7
    %v538 = vsub.s32 %v535, %v537
    %v539 = vrot.slane %v525, %v538
    %v540 = vcombine.high %v516, 0.0
    %v541 = vcombine.high %v523, 0.0
    %v542 = vcombine.high %v532, 0.0
    %v543 = vcombine.high %v539, 0.0
    %v544 = vcombine.low %v455, %v463
    %v545 = vcombine.high %v455, %v463
    %v547 = vunpack.c.l.s4 1983009808
    %v548 = vunpack.c.0.s8 %v547
    %v549 = vlaneseq
    %v550 = vshrl.u32 %v549, 7
    %v551 = vsub.s32 %v548, %v550
    %v552 = vrot.slane %v544, %v551
    %v554 = vunpack.c.l.s4 1983009808
    %v555 = vunpack.c.0.s8 %v554
    %v556 = vlaneseq
    %v557 = vshrl.u32 %v556, 7
    %v558 = vsub.s32 %v555, %v557
    %v559 = vrot.slane %v545, %v558
    %v560 = vcombine.low %v459, %v467
    %v561 = vcombine.high %v459, %v467
    %v563 = vunpack.c.l.s4 1983009808
    %v564 = vunpack.c.0.s8 %v563
    %v565 = vlaneseq
    %v566 = vshrl.u32 %v565, 7
    %v567 = vsub.s32 %v564, %v566
    %v568 = vrot.slane %v560, %v567
    %v570 = vunpack.c.l.s4 1983009808
    %v571 = vunpack.c.0.s8 %v570
    %v572 = vlaneseq
    %v573 = vshrl.u32 %v572, 7
    %v574 = vsub.s32 %v571, %v573
    %v575 = vrot.slane %v561, %v574
    %v576 = vcombine.low %v552, %v568
    %v577 = vcombine.high %v552, %v568
    %v579 = vunpack.c.l.s4 1934713408
    %v580 = vunpack.c.0.s8 %v579
    %v581 = vlaneseq
    %v582 = vshrl.u32 %v581, 7
    %v583 = vsub.s32 %v580, %v582
    %v584 = vrot.slane %v576, %v583
    %v586 = vunpack.c.l.s4 1934713408
    %v587 = vunpack.c.0.s8 %v586
    %v588 = vlaneseq
    %v589 = vshrl.u32 %v588, 7
    %v590 = vsub.s32 %v587, %v589
    %v591 = vrot.slane %v577, %v590
    %v592 = vcombine.low %v559, %v575
    %v593 = vcombine.high %v559, %v575
    %v595 = vunpack.c.l.s4 1934713408
    %v596 = vunpack.c.0.s8 %v595
    %v597 = vlaneseq
    %v598 = vshrl.u32 %v597, 7
    %v599 = vsub.s32 %v596, %v598
    %v600 = vrot.slane %v592, %v599
    %v602 = vunpack.c.l.s4 1934713408
    %v603 = vunpack.c.0.s8 %v602
    %v604 = vlaneseq
    %v605 = vshrl.u32 %v604, 7
    %v606 = vsub.s32 %v603, %v605
    %v607 = vrot.slane %v593, %v606
    %v608 = vcombine.high %v584, 0.0
    %v609 = vcombine.high %v591, 0.0
    %v610 = vcombine.high %v600, 0.0
    %v611 = vcombine.high %v607, 0.0
    %v612 = vcombine.low %v516, %v523
    %v614 = vunpack.c.l.s4 1983009808
    %v615 = vunpack.c.0.s8 %v614
    %v616 = vlaneseq
    %v617 = vshrl.u32 %v616, 7
    %v618 = vsub.s32 %v615, %v617
    %v619 = vrot.slane %v612, %v618
    %v620 = vcombine.low %v540, %v541
    %v622 = vunpack.c.l.s4 1983009808
    %v623 = vunpack.c.0.s8 %v622
    %v624 = vlaneseq
    %v625 = vshrl.u32 %v624, 7
    %v626 = vsub.s32 %v623, %v625
    %v627 = vrot.slane %v620, %v626
    %v628 = vcombine.low %v532, %v539
    %v630 = vunpack.c.l.s4 1983009808
    %v631 = vunpack.c.0.s8 %v630
    %v632 = vlaneseq
    %v633 = vshrl.u32 %v632, 7
    %v634 = vsub.s32 %v631, %v633
    %v635 = vrot.slane %v628, %v634
    %v636 = vcombine.low %v542, %v543
    %v638 = vunpack.c.l.s4 1983009808
    %v639 = vunpack.c.0.s8 %v638
    %v640 = vlaneseq
    %v641 = vshrl.u32 %v640, 7
    %v642 = vsub.s32 %v639, %v641
    %v643 = vrot.slane %v636, %v642
    %v644 = vcombine.low %v619, %v627
    %v645 = vcombine.high %v619, %v627
    %v647 = vunpack.c.l.s4 1934713408
    %v648 = vunpack.c.0.s8 %v647
    %v649 = vlaneseq
    %v650 = vshrl.u32 %v649, 7
    %v651 = vsub.s32 %v648, %v650
    %v652 = vrot.slane %v644, %v651
    %v654 = vunpack.c.l.s4 1934713408
    %v655 = vunpack.c.0.s8 %v654
    %v656 = vlaneseq
    %v657 = vshrl.u32 %v656, 7
    %v658 = vsub.s32 %v655, %v657
    %v659 = vrot.slane %v645, %v658
    %v660 = vcombine.low %v635, %v643
    %v661 = vcombine.high %v635, %v643
    %v663 = vunpack.c.l.s4 1934713408
    %v664 = vunpack.c.0.s8 %v663
    %v665 = vlaneseq
    %v666 = vshrl.u32 %v665, 7
    %v667 = vsub.s32 %v664, %v666
    %v668 = vrot.slane %v660, %v667
    %v670 = vunpack.c.l.s4 1934713408
    %v671 = vunpack.c.0.s8 %v670
    %v672 = vlaneseq
    %v673 = vshrl.u32 %v672, 7
    %v674 = vsub.s32 %v671, %v673
    %v675 = vrot.slane %v661, %v674
    %v676 = vcombine.low %v652, %v668
    %v677 = vcombine.high %v652, %v668
    %v678 = vcombine.low %v659, %v675
    %v679 = vcombine.high %v659, %v675
    %v680 = vcombine.low %v584, %v591
    %v682 = vunpack.c.l.s4 1983009808
    %v683 = vunpack.c.0.s8 %v682
    %v684 = vlaneseq
    %v685 = vshrl.u32 %v684, 7
    %v686 = vsub.s32 %v683, %v685
    %v687 = vrot.slane %v680, %v686
    %v688 = vcombine.low %v608, %v609
    %v690 = vunpack.c.l.s4 1983009808
    %v691 = vunpack.c.0.s8 %v690
    %v692 = vlaneseq
    %v693 = vshrl.u32 %v692, 7
    %v694 = vsub.s32 %v691, %v693
    %v695 = vrot.slane %v688, %v694
    %v696 = vcombine.low %v600, %v607
    %v698 = vunpack.c.l.s4 1983009808
    %v699 = vunpack.c.0.s8 %v698
    %v700 = vlaneseq
    %v701 = vshrl.u32 %v700, 7
    %v702 = vsub.s32 %v699, %v701
    %v703 = vrot.slane %v696, %v702
    %v704 = vcombine.low %v610, %v611
    %v706 = vunpack.c.l.s4 1983009808
    %v707 = vunpack.c.0.s8 %v706
    %v708 = vlaneseq
    %v709 = vshrl.u32 %v708, 7
    %v710 = vsub.s32 %v707, %v709
    %v711 = vrot.slane %v704, %v710
    %v712 = vcombine.low %v687, %v695
    %v713 = vcombine.high %v687, %v695
    %v715 = vunpack.c.l.s4 1934713408
    %v716 = vunpack.c.0.s8 %v715
    %v717 = vlaneseq
    %v718 = vshrl.u32 %v717, 7
    %v719 = vsub.s32 %v716, %v718
    %v720 = vrot.slane %v712, %v719
    %v722 = vunpack.c.l.s4 1934713408
    %v723 = vunpack.c.0.s8 %v722
    %v724 = vlaneseq
    %v725 = vshrl.u32 %v724, 7
    %v726 = vsub.s32 %v723, %v725
    %v727 = vrot.slane %v713, %v726
    %v728 = vcombine.low %v703, %v711
    %v729 = vcombine.high %v703, %v711
    %v731 = vunpack.c.l.s4 1934713408
    %v732 = vunpack.c.0.s8 %v731
    %v733 = vlaneseq
    %v734 = vshrl.u32 %v733, 7
    %v735 = vsub.s32 %v732, %v734
    %v736 = vrot.slane %v728, %v735
    %v738 = vunpack.c.l.s4 1934713408
    %v739 = vunpack.c.0.s8 %v738
    %v740 = vlaneseq
    %v741 = vshrl.u32 %v740, 7
    %v742 = vsub.s32 %v739, %v741
    %v743 = vrot.slane %v729, %v742
    %v744 = vcombine.low %v720, %v736
    %v745 = vcombine.high %v720, %v736
    %v746 = vcombine.low %v727, %v743
    %v747 = vcombine.high %v727, %v743
    %748 = vrot.lane.b32.xlu0 %v152, 64
    %v749 = vpop.permute.xlu0 %748
    %750 = vrot.lane.b32.xlu0 %v157, 64
    %v751 = vpop.permute.xlu0 %750
    %752 = vrot.lane.b32.xlu0 %v163, 64
    %v753 = vpop.permute.xlu0 %752
    %754 = vrot.lane.b32.xlu0 %v165, 64
    %v755 = vpop.permute.xlu0 %754
    %756 = vrot.lane.b32.xlu0 %v169, 64
    %v757 = vpop.permute.xlu0 %756
    %758 = vrot.lane.b32.xlu0 %v171, 64
    %v759 = vpop.permute.xlu0 %758
    %760 = vrot.lane.b32.xlu0 %v175, 64
    %v761 = vpop.permute.xlu0 %760
    %762 = vrot.lane.b32.xlu0 %v177, 64
    %v763 = vpop.permute.xlu0 %762
    %v772 = vcombine.low %v749, %v757
    %v773 = vcombine.high %v749, %v757
    %v775 = vunpack.c.l.s4 1983009808
    %v776 = vunpack.c.0.s8 %v775
    %v777 = vlaneseq
    %v778 = vshrl.u32 %v777, 7
    %v779 = vsub.s32 %v776, %v778
    %v780 = vrot.slane %v772, %v779
    %v782 = vunpack.c.l.s4 1983009808
    %v783 = vunpack.c.0.s8 %v782
    %v784 = vlaneseq
    %v785 = vshrl.u32 %v784, 7
    %v786 = vsub.s32 %v783, %v785
    %v787 = vrot.slane %v773, %v786
    %v788 = vcombine.low %v753, %v761
    %v789 = vcombine.high %v753, %v761
    %v791 = vunpack.c.l.s4 1983009808
    %v792 = vunpack.c.0.s8 %v791
    %v793 = vlaneseq
    %v794 = vshrl.u32 %v793, 7
    %v795 = vsub.s32 %v792, %v794
    %v796 = vrot.slane %v788, %v795
    %v798 = vunpack.c.l.s4 1983009808
    %v799 = vunpack.c.0.s8 %v798
    %v800 = vlaneseq
    %v801 = vshrl.u32 %v800, 7
    %v802 = vsub.s32 %v799, %v801
    %v803 = vrot.slane %v789, %v802
    %v804 = vcombine.low %v780, %v796
    %v805 = vcombine.high %v780, %v796
    %v807 = vunpack.c.l.s4 1934713408
    %v808 = vunpack.c.0.s8 %v807
    %v809 = vlaneseq
    %v810 = vshrl.u32 %v809, 7
    %v811 = vsub.s32 %v808, %v810
    %v812 = vrot.slane %v804, %v811
    %v814 = vunpack.c.l.s4 1934713408
    %v815 = vunpack.c.0.s8 %v814
    %v816 = vlaneseq
    %v817 = vshrl.u32 %v816, 7
    %v818 = vsub.s32 %v815, %v817
    %v819 = vrot.slane %v805, %v818
    %v820 = vcombine.low %v787, %v803
    %v821 = vcombine.high %v787, %v803
    %v823 = vunpack.c.l.s4 1934713408
    %v824 = vunpack.c.0.s8 %v823
    %v825 = vlaneseq
    %v826 = vshrl.u32 %v825, 7
    %v827 = vsub.s32 %v824, %v826
    %v828 = vrot.slane %v820, %v827
    %v830 = vunpack.c.l.s4 1934713408
    %v831 = vunpack.c.0.s8 %v830
    %v832 = vlaneseq
    %v833 = vshrl.u32 %v832, 7
    %v834 = vsub.s32 %v831, %v833
    %v835 = vrot.slane %v821, %v834
    %v836 = vcombine.high %v812, 0.0
    %v837 = vcombine.high %v819, 0.0
    %v838 = vcombine.high %v828, 0.0
    %v839 = vcombine.high %v835, 0.0
    %v840 = vcombine.low %v751, %v759
    %v841 = vcombine.high %v751, %v759
    %v843 = vunpack.c.l.s4 1983009808
    %v844 = vunpack.c.0.s8 %v843
    %v845 = vlaneseq
    %v846 = vshrl.u32 %v845, 7
    %v847 = vsub.s32 %v844, %v846
    %v848 = vrot.slane %v840, %v847
    %v850 = vunpack.c.l.s4 1983009808
    %v851 = vunpack.c.0.s8 %v850
    %v852 = vlaneseq
    %v853 = vshrl.u32 %v852, 7
    %v854 = vsub.s32 %v851, %v853
    %v855 = vrot.slane %v841, %v854
    %v856 = vcombine.low %v755, %v763
    %v857 = vcombine.high %v755, %v763
    %v859 = vunpack.c.l.s4 1983009808
    %v860 = vunpack.c.0.s8 %v859
    %v861 = vlaneseq
    %v862 = vshrl.u32 %v861, 7
    %v863 = vsub.s32 %v860, %v862
    %v864 = vrot.slane %v856, %v863
    %v866 = vunpack.c.l.s4 1983009808
    %v867 = vunpack.c.0.s8 %v866
    %v868 = vlaneseq
    %v869 = vshrl.u32 %v868, 7
    %v870 = vsub.s32 %v867, %v869
    %v871 = vrot.slane %v857, %v870
    %v872 = vcombine.low %v848, %v864
    %v873 = vcombine.high %v848, %v864
    %v875 = vunpack.c.l.s4 1934713408
    %v876 = vunpack.c.0.s8 %v875
    %v877 = vlaneseq
    %v878 = vshrl.u32 %v877, 7
    %v879 = vsub.s32 %v876, %v878
    %v880 = vrot.slane %v872, %v879
    %v882 = vunpack.c.l.s4 1934713408
    %v883 = vunpack.c.0.s8 %v882
    %v884 = vlaneseq
    %v885 = vshrl.u32 %v884, 7
    %v886 = vsub.s32 %v883, %v885
    %v887 = vrot.slane %v873, %v886
    %v888 = vcombine.low %v855, %v871
    %v889 = vcombine.high %v855, %v871
    %v891 = vunpack.c.l.s4 1934713408
    %v892 = vunpack.c.0.s8 %v891
    %v893 = vlaneseq
    %v894 = vshrl.u32 %v893, 7
    %v895 = vsub.s32 %v892, %v894
    %v896 = vrot.slane %v888, %v895
    %v898 = vunpack.c.l.s4 1934713408
    %v899 = vunpack.c.0.s8 %v898
    %v900 = vlaneseq
    %v901 = vshrl.u32 %v900, 7
    %v902 = vsub.s32 %v899, %v901
    %v903 = vrot.slane %v889, %v902
    %v904 = vcombine.high %v880, 0.0
    %v905 = vcombine.high %v887, 0.0
    %v906 = vcombine.high %v896, 0.0
    %v907 = vcombine.high %v903, 0.0
    %v908 = vcombine.low %v812, %v819
    %v910 = vunpack.c.l.s4 1983009808
    %v911 = vunpack.c.0.s8 %v910
    %v912 = vlaneseq
    %v913 = vshrl.u32 %v912, 7
    %v914 = vsub.s32 %v911, %v913
    %v915 = vrot.slane %v908, %v914
    %v916 = vcombine.low %v836, %v837
    %v918 = vunpack.c.l.s4 1983009808
    %v919 = vunpack.c.0.s8 %v918
    %v920 = vlaneseq
    %v921 = vshrl.u32 %v920, 7
    %v922 = vsub.s32 %v919, %v921
    %v923 = vrot.slane %v916, %v922
    %v924 = vcombine.low %v828, %v835
    %v926 = vunpack.c.l.s4 1983009808
    %v927 = vunpack.c.0.s8 %v926
    %v928 = vlaneseq
    %v929 = vshrl.u32 %v928, 7
    %v930 = vsub.s32 %v927, %v929
    %v931 = vrot.slane %v924, %v930
    %v932 = vcombine.low %v838, %v839
    %v934 = vunpack.c.l.s4 1983009808
    %v935 = vunpack.c.0.s8 %v934
    %v936 = vlaneseq
    %v937 = vshrl.u32 %v936, 7
    %v938 = vsub.s32 %v935, %v937
    %v939 = vrot.slane %v932, %v938
    %v940 = vcombine.low %v915, %v923
    %v941 = vcombine.high %v915, %v923
    %v943 = vunpack.c.l.s4 1934713408
    %v944 = vunpack.c.0.s8 %v943
    %v945 = vlaneseq
    %v946 = vshrl.u32 %v945, 7
    %v947 = vsub.s32 %v944, %v946
    %v948 = vrot.slane %v940, %v947
    %v950 = vunpack.c.l.s4 1934713408
    %v951 = vunpack.c.0.s8 %v950
    %v952 = vlaneseq
    %v953 = vshrl.u32 %v952, 7
    %v954 = vsub.s32 %v951, %v953
    %v955 = vrot.slane %v941, %v954
    %v956 = vcombine.low %v931, %v939
    %v957 = vcombine.high %v931, %v939
    %v959 = vunpack.c.l.s4 1934713408
    %v960 = vunpack.c.0.s8 %v959
    %v961 = vlaneseq
    %v962 = vshrl.u32 %v961, 7
    %v963 = vsub.s32 %v960, %v962
    %v964 = vrot.slane %v956, %v963
    %v966 = vunpack.c.l.s4 1934713408
    %v967 = vunpack.c.0.s8 %v966
    %v968 = vlaneseq
    %v969 = vshrl.u32 %v968, 7
    %v970 = vsub.s32 %v967, %v969
    %v971 = vrot.slane %v957, %v970
    %v972 = vcombine.low %v948, %v964
    %v973 = vcombine.high %v948, %v964
    %v974 = vcombine.low %v955, %v971
    %v975 = vcombine.high %v955, %v971
    %v976 = vcombine.low %v880, %v887
    %v978 = vunpack.c.l.s4 1983009808
    %v979 = vunpack.c.0.s8 %v978
    %v980 = vlaneseq
    %v981 = vshrl.u32 %v980, 7
    %v982 = vsub.s32 %v979, %v981
    %v983 = vrot.slane %v976, %v982
    %v984 = vcombine.low %v904, %v905
    %v986 = vunpack.c.l.s4 1983009808
    %v987 = vunpack.c.0.s8 %v986
    %v988 = vlaneseq
    %v989 = vshrl.u32 %v988, 7
    %v990 = vsub.s32 %v987, %v989
    %v991 = vrot.slane %v984, %v990
    %v992 = vcombine.low %v896, %v903
    %v994 = vunpack.c.l.s4 1983009808
    %v995 = vunpack.c.0.s8 %v994
    %v996 = vlaneseq
    %v997 = vshrl.u32 %v996, 7
    %v998 = vsub.s32 %v995, %v997
    %v999 = vrot.slane %v992, %v998
    %v1000 = vcombine.low %v906, %v907
    %v1002 = vunpack.c.l.s4 1983009808
    %v1003 = vunpack.c.0.s8 %v1002
    %v1004 = vlaneseq
    %v1005 = vshrl.u32 %v1004, 7
    %v1006 = vsub.s32 %v1003, %v1005
    %v1007 = vrot.slane %v1000, %v1006
    %v1008 = vcombine.low %v983, %v991
    %v1009 = vcombine.high %v983, %v991
    %v1011 = vunpack.c.l.s4 1934713408
    %v1012 = vunpack.c.0.s8 %v1011
    %v1013 = vlaneseq
    %v1014 = vshrl.u32 %v1013, 7
    %v1015 = vsub.s32 %v1012, %v1014
    %v1016 = vrot.slane %v1008, %v1015
    %v1018 = vunpack.c.l.s4 1934713408
    %v1019 = vunpack.c.0.s8 %v1018
    %v1020 = vlaneseq
    %v1021 = vshrl.u32 %v1020, 7
    %v1022 = vsub.s32 %v1019, %v1021
    %v1023 = vrot.slane %v1009, %v1022
    %v1024 = vcombine.low %v999, %v1007
    %v1025 = vcombine.high %v999, %v1007
    %v1027 = vunpack.c.l.s4 1934713408
    %v1028 = vunpack.c.0.s8 %v1027
    %v1029 = vlaneseq
    %v1030 = vshrl.u32 %v1029, 7
    %v1031 = vsub.s32 %v1028, %v1030
    %v1032 = vrot.slane %v1024, %v1031
    %v1034 = vunpack.c.l.s4 1934713408
    %v1035 = vunpack.c.0.s8 %v1034
    %v1036 = vlaneseq
    %v1037 = vshrl.u32 %v1036, 7
    %v1038 = vsub.s32 %v1035, %v1037
    %v1039 = vrot.slane %v1025, %v1038
    %v1040 = vcombine.low %v1016, %v1032
    %v1041 = vcombine.high %v1016, %v1032
    %v1042 = vcombine.low %v1023, %v1039
    %v1043 = vcombine.high %v1023, %v1039
    %vm1044 = vcmask 64512
    %v1046 = vsel %vm1044, %v380, 0
    %v1049 = vsel %vm1044, %v676, 0
    %1051 = vmatprep.subr.mxu0 0.0
    %1052 = vmatpush1.xpose.msra.mxu0 %v1049
    %1053 = vmatprep.subr.mxu0 0.0
    %1054 = vmatpush1.xpose.msra.mxu0 0.0
    %1055 = vmatprep.subr.mxu0 0.0
    %1056 = vmatpush1.xpose.msra.mxu0 0.0
    %1057 = vmatprep.subr.mxu0 0.0
    %1058 = vmatpush1.xpose.msra.mxu0 0.0
    %1059 = vmatprep.subr.mxu0 0.0
    %1060 = vmatpush1.xpose.msra.mxu0 0.0
    %1061 = vmatprep.subr.mxu0 0.0
    %1062 = vmatpush1.xpose.msra.mxu0 0.0
    %1063 = vmatprep.subr.mxu0 0.0
    %1064 = vmatpush1.xpose.msra.mxu0 0.0
    %1065 = vmatprep.subr.mxu0 0.0
    %1066 = vmatpush1.xpose.msra.mxu0 0.0
    %1067 = vmatprep.subr.mxu0 0.0
    %1068 = vmatpush1.xpose.msra.mxu0 0.0
    %1069 = vmatprep.subr.mxu0 0.0
    %1070 = vmatpush1.xpose.msra.mxu0 0.0
    %1071 = vmatprep.subr.mxu0 0.0
    %1072 = vmatpush1.xpose.msra.mxu0 0.0
    %1073 = vmatprep.subr.mxu0 0.0
    %1074 = vmatpush1.xpose.msra.mxu0 0.0
    %1075 = vmatprep.subr.mxu0 0.0
    %1076 = vmatpush1.xpose.msra.mxu0 0.0
    %1077 = vmatprep.subr.mxu0 0.0
    %1078 = vmatpush1.xpose.msra.mxu0 0.0
    %1079 = vmatprep.subr.mxu0 0.0
    %1080 = vmatpush1.xpose.msra.mxu0 0.0
    %1081 = vmatprep.subr.mxu0 0.0
    %1082 = vmatpush1.xpose.msra.mxu0 0.0
    %1083 = vmatprep.subr.mxu0 0.0
    %1084 = vmatpush1.xpose.msra.mxu0 0.0
    %1085 = vmatprep.subr.mxu0 0.0
    %1086 = vmatpush1.xpose.msra.mxu0 0.0
    %1087 = vmatprep.subr.mxu0 0.0
    %1088 = vmatpush1.xpose.msra.mxu0 0.0
    %1089 = vmatprep.subr.mxu0 0.0
    %1090 = vmatpush1.xpose.msra.mxu0 0.0
    %1091 = vmatprep.subr.mxu0 0.0
    %1092 = vmatpush1.xpose.msra.mxu0 0.0
    %1093 = vmatprep.subr.mxu0 0.0
    %1094 = vmatpush1.xpose.msra.mxu0 0.0
    %1095 = vmatprep.subr.mxu0 0.0
    %1096 = vmatpush1.xpose.msra.mxu0 0.0
    %1097 = vmatprep.subr.mxu0 0.0
    %1098 = vmatpush1.xpose.msra.mxu0 0.0
    %1099 = vmatprep.subr.mxu0 0.0
    %1100 = vmatpush1.xpose.msra.mxu0 0.0
    %1101 = vmatprep.subr.mxu0 0.0
    %1102 = vmatpush1.xpose.msra.mxu0 0.0
    %1103 = vmatprep.subr.mxu0 0.0
    %1104 = vmatpush1.xpose.msra.mxu0 0.0
    %1105 = vmatprep.subr.mxu0 0.0
    %1106 = vmatpush1.xpose.msra.mxu0 0.0
    %1107 = vmatprep.subr.mxu0 0.0
    %1108 = vmatpush1.xpose.msra.mxu0 0.0
    %1109 = vmatprep.subr.mxu0 0.0
    %1110 = vmatpush1.xpose.msra.mxu0 0.0
    %1111 = vmatprep.subr.mxu0 0.0
    %1112 = vmatpush1.xpose.msra.mxu0 0.0
    %1113 = vmatprep.subr.mxu0 0.0
    %1114 = vmatpush1.xpose.msra.mxu0 0.0
    %1115 = vmatprep.mubr.f32.mxu0 0.0
    %1116 = vmatmul.mubr.f32.gmra.mrb[0].mxu0 %v1046
    %v1117 = vpop.f32.mrb[0].mxu0
    %v1118 = vadd.f32 0.0, %v1117
    %v1119 = vpop.f32.mrb[0].mxu0
    %1120 = vdwg.mxu0
    %v1122 = vsel %vm1044, %v381, 0
    %v1125 = vsel %vm1044, %v677, 0
    %1127 = vmatprep.subr.mxu0 0.0
    %1128 = vmatpush1.xpose.msra.mxu0 %v1125
    %1129 = vmatprep.subr.mxu0 0.0
    %1130 = vmatpush1.xpose.msra.mxu0 0.0
    %1131 = vmatprep.subr.mxu0 0.0
    %1132 = vmatpush1.xpose.msra.mxu0 0.0
    %1133 = vmatprep.subr.mxu0 0.0
    %1134 = vmatpush1.xpose.msra.mxu0 0.0
    %1135 = vmatprep.subr.mxu0 0.0
    %1136 = vmatpush1.xpose.msra.mxu0 0.0
    %1137 = vmatprep.subr.mxu0 0.0
    %1138 = vmatpush1.xpose.msra.mxu0 0.0
    %1139 = vmatprep.subr.mxu0 0.0
    %1140 = vmatpush1.xpose.msra.mxu0 0.0
    %1141 = vmatprep.subr.mxu0 0.0
    %1142 = vmatpush1.xpose.msra.mxu0 0.0
    %1143 = vmatprep.subr.mxu0 0.0
    %1144 = vmatpush1.xpose.msra.mxu0 0.0
    %1145 = vmatprep.subr.mxu0 0.0
    %1146 = vmatpush1.xpose.msra.mxu0 0.0
    %1147 = vmatprep.subr.mxu0 0.0
    %1148 = vmatpush1.xpose.msra.mxu0 0.0
    %1149 = vmatprep.subr.mxu0 0.0
    %1150 = vmatpush1.xpose.msra.mxu0 0.0
    %1151 = vmatprep.subr.mxu0 0.0
    %1152 = vmatpush1.xpose.msra.mxu0 0.0
    %1153 = vmatprep.subr.mxu0 0.0
    %1154 = vmatpush1.xpose.msra.mxu0 0.0
    %1155 = vmatprep.subr.mxu0 0.0
    %1156 = vmatpush1.xpose.msra.mxu0 0.0
    %1157 = vmatprep.subr.mxu0 0.0
    %1158 = vmatpush1.xpose.msra.mxu0 0.0
    %1159 = vmatprep.subr.mxu0 0.0
    %1160 = vmatpush1.xpose.msra.mxu0 0.0
    %1161 = vmatprep.subr.mxu0 0.0
    %1162 = vmatpush1.xpose.msra.mxu0 0.0
    %1163 = vmatprep.subr.mxu0 0.0
    %1164 = vmatpush1.xpose.msra.mxu0 0.0
    %1165 = vmatprep.subr.mxu0 0.0
    %1166 = vmatpush1.xpose.msra.mxu0 0.0
    %1167 = vmatprep.subr.mxu0 0.0
    %1168 = vmatpush1.xpose.msra.mxu0 0.0
    %1169 = vmatprep.subr.mxu0 0.0
    %1170 = vmatpush1.xpose.msra.mxu0 0.0
    %1171 = vmatprep.subr.mxu0 0.0
    %1172 = vmatpush1.xpose.msra.mxu0 0.0
    %1173 = vmatprep.subr.mxu0 0.0
    %1174 = vmatpush1.xpose.msra.mxu0 0.0
    %1175 = vmatprep.subr.mxu0 0.0
    %1176 = vmatpush1.xpose.msra.mxu0 0.0
    %1177 = vmatprep.subr.mxu0 0.0
    %1178 = vmatpush1.xpose.msra.mxu0 0.0
    %1179 = vmatprep.subr.mxu0 0.0
    %1180 = vmatpush1.xpose.msra.mxu0 0.0
    %1181 = vmatprep.subr.mxu0 0.0
    %1182 = vmatpush1.xpose.msra.mxu0 0.0
    %1183 = vmatprep.subr.mxu0 0.0
    %1184 = vmatpush1.xpose.msra.mxu0 0.0
    %1185 = vmatprep.subr.mxu0 0.0
    %1186 = vmatpush1.xpose.msra.mxu0 0.0
    %1187 = vmatprep.subr.mxu0 0.0
    %1188 = vmatpush1.xpose.msra.mxu0 0.0
    %1189 = vmatprep.subr.mxu0 0.0
    %1190 = vmatpush1.xpose.msra.mxu0 0.0
    %1191 = vmatprep.mubr.f32.mxu0 0.0
    %1192 = vmatmul.mubr.f32.gmra.mrb[0].mxu0 %v1122
    %v1193 = vpop.f32.mrb[0].mxu0
    %v1194 = vadd.f32 0.0, %v1193
    %v1195 = vpop.f32.mrb[0].mxu0
    %1196 = vdwg.mxu0
    %v1198 = vsel %vm1044, %v382, 0
    %v1201 = vsel %vm1044, %v678, 0
    %1203 = vmatprep.subr.mxu0 0.0
    %1204 = vmatpush1.xpose.msra.mxu0 %v1201
    %1205 = vmatprep.subr.mxu0 0.0
    %1206 = vmatpush1.xpose.msra.mxu0 0.0
    %1207 = vmatprep.subr.mxu0 0.0
    %1208 = vmatpush1.xpose.msra.mxu0 0.0
    %1209 = vmatprep.subr.mxu0 0.0
    %1210 = vmatpush1.xpose.msra.mxu0 0.0
    %1211 = vmatprep.subr.mxu0 0.0
    %1212 = vmatpush1.xpose.msra.mxu0 0.0
    %1213 = vmatprep.subr.mxu0 0.0
    %1214 = vmatpush1.xpose.msra.mxu0 0.0
    %1215 = vmatprep.subr.mxu0 0.0
    %1216 = vmatpush1.xpose.msra.mxu0 0.0
    %1217 = vmatprep.subr.mxu0 0.0
    %1218 = vmatpush1.xpose.msra.mxu0 0.0
    %1219 = vmatprep.subr.mxu0 0.0
    %1220 = vmatpush1.xpose.msra.mxu0 0.0
    %1221 = vmatprep.subr.mxu0 0.0
    %1222 = vmatpush1.xpose.msra.mxu0 0.0
    %1223 = vmatprep.subr.mxu0 0.0
    %1224 = vmatpush1.xpose.msra.mxu0 0.0
    %1225 = vmatprep.subr.mxu0 0.0
    %1226 = vmatpush1.xpose.msra.mxu0 0.0
    %1227 = vmatprep.subr.mxu0 0.0
    %1228 = vmatpush1.xpose.msra.mxu0 0.0
    %1229 = vmatprep.subr.mxu0 0.0
    %1230 = vmatpush1.xpose.msra.mxu0 0.0
    %1231 = vmatprep.subr.mxu0 0.0
    %1232 = vmatpush1.xpose.msra.mxu0 0.0
    %1233 = vmatprep.subr.mxu0 0.0
    %1234 = vmatpush1.xpose.msra.mxu0 0.0
    %1235 = vmatprep.subr.mxu0 0.0
    %1236 = vmatpush1.xpose.msra.mxu0 0.0
    %1237 = vmatprep.subr.mxu0 0.0
    %1238 = vmatpush1.xpose.msra.mxu0 0.0
    %1239 = vmatprep.subr.mxu0 0.0
    %1240 = vmatpush1.xpose.msra.mxu0 0.0
    %1241 = vmatprep.subr.mxu0 0.0
    %1242 = vmatpush1.xpose.msra.mxu0 0.0
    %1243 = vmatprep.subr.mxu0 0.0
    %1244 = vmatpush1.xpose.msra.mxu0 0.0
    %1245 = vmatprep.subr.mxu0 0.0
    %1246 = vmatpush1.xpose.msra.mxu0 0.0
    %1247 = vmatprep.subr.mxu0 0.0
    %1248 = vmatpush1.xpose.msra.mxu0 0.0
    %1249 = vmatprep.subr.mxu0 0.0
    %1250 = vmatpush1.xpose.msra.mxu0 0.0
    %1251 = vmatprep.subr.mxu0 0.0
    %1252 = vmatpush1.xpose.msra.mxu0 0.0
    %1253 = vmatprep.subr.mxu0 0.0
    %1254 = vmatpush1.xpose.msra.mxu0 0.0
    %1255 = vmatprep.subr.mxu0 0.0
    %1256 = vmatpush1.xpose.msra.mxu0 0.0
    %1257 = vmatprep.subr.mxu0 0.0
    %1258 = vmatpush1.xpose.msra.mxu0 0.0
    %1259 = vmatprep.subr.mxu0 0.0
    %1260 = vmatpush1.xpose.msra.mxu0 0.0
    %1261 = vmatprep.subr.mxu0 0.0
    %1262 = vmatpush1.xpose.msra.mxu0 0.0
    %1263 = vmatprep.subr.mxu0 0.0
    %1264 = vmatpush1.xpose.msra.mxu0 0.0
    %1265 = vmatprep.subr.mxu0 0.0
    %1266 = vmatpush1.xpose.msra.mxu0 0.0
    %1267 = vmatprep.mubr.f32.mxu0 0.0
    %1268 = vmatmul.mubr.f32.gmra.mrb[0].mxu0 %v1198
    %v1269 = vpop.f32.mrb[0].mxu0
    %v1270 = vadd.f32 0.0, %v1269
    %v1271 = vpop.f32.mrb[0].mxu0
    %1272 = vdwg.mxu0
    %v1274 = vsel %vm1044, %v383, 0
    %v1277 = vsel %vm1044, %v679, 0
    %1279 = vmatprep.subr.mxu0 0.0
    %1280 = vmatpush1.xpose.msra.mxu0 %v1277
    %1281 = vmatprep.subr.mxu0 0.0
    %1282 = vmatpush1.xpose.msra.mxu0 0.0
    %1283 = vmatprep.subr.mxu0 0.0
    %1284 = vmatpush1.xpose.msra.mxu0 0.0
    %1285 = vmatprep.subr.mxu0 0.0
    %1286 = vmatpush1.xpose.msra.mxu0 0.0
    %1287 = vmatprep.subr.mxu0 0.0
    %1288 = vmatpush1.xpose.msra.mxu0 0.0
    %1289 = vmatprep.subr.mxu0 0.0
    %1290 = vmatpush1.xpose.msra.mxu0 0.0
    %1291 = vmatprep.subr.mxu0 0.0
    %1292 = vmatpush1.xpose.msra.mxu0 0.0
    %1293 = vmatprep.subr.mxu0 0.0
    %1294 = vmatpush1.xpose.msra.mxu0 0.0
    %1295 = vmatprep.subr.mxu0 0.0
    %1296 = vmatpush1.xpose.msra.mxu0 0.0
    %1297 = vmatprep.subr.mxu0 0.0
    %1298 = vmatpush1.xpose.msra.mxu0 0.0
    %1299 = vmatprep.subr.mxu0 0.0
    %1300 = vmatpush1.xpose.msra.mxu0 0.0
    %1301 = vmatprep.subr.mxu0 0.0
    %1302 = vmatpush1.xpose.msra.mxu0 0.0
    %1303 = vmatprep.subr.mxu0 0.0
    %1304 = vmatpush1.xpose.msra.mxu0 0.0
    %1305 = vmatprep.subr.mxu0 0.0
    %1306 = vmatpush1.xpose.msra.mxu0 0.0
    %1307 = vmatprep.subr.mxu0 0.0
    %1308 = vmatpush1.xpose.msra.mxu0 0.0
    %1309 = vmatprep.subr.mxu0 0.0
    %1310 = vmatpush1.xpose.msra.mxu0 0.0
    %1311 = vmatprep.subr.mxu0 0.0
    %1312 = vmatpush1.xpose.msra.mxu0 0.0
    %1313 = vmatprep.subr.mxu0 0.0
    %1314 = vmatpush1.xpose.msra.mxu0 0.0
    %1315 = vmatprep.subr.mxu0 0.0
    %1316 = vmatpush1.xpose.msra.mxu0 0.0
    %1317 = vmatprep.subr.mxu0 0.0
    %1318 = vmatpush1.xpose.msra.mxu0 0.0
    %1319 = vmatprep.subr.mxu0 0.0
    %1320 = vmatpush1.xpose.msra.mxu0 0.0
    %1321 = vmatprep.subr.mxu0 0.0
    %1322 = vmatpush1.xpose.msra.mxu0 0.0
    %1323 = vmatprep.subr.mxu0 0.0
    %1324 = vmatpush1.xpose.msra.mxu0 0.0
    %1325 = vmatprep.subr.mxu0 0.0
    %1326 = vmatpush1.xpose.msra.mxu0 0.0
    %1327 = vmatprep.subr.mxu0 0.0
    %1328 = vmatpush1.xpose.msra.mxu0 0.0
    %1329 = vmatprep.subr.mxu0 0.0
    %1330 = vmatpush1.xpose.msra.mxu0 0.0
    %1331 = vmatprep.subr.mxu0 0.0
    %1332 = vmatpush1.xpose.msra.mxu0 0.0
    %1333 = vmatprep.subr.mxu0 0.0
    %1334 = vmatpush1.xpose.msra.mxu0 0.0
    %1335 = vmatprep.subr.mxu0 0.0
    %1336 = vmatpush1.xpose.msra.mxu0 0.0
    %1337 = vmatprep.subr.mxu0 0.0
    %1338 = vmatpush1.xpose.msra.mxu0 0.0
    %1339 = vmatprep.subr.mxu0 0.0
    %1340 = vmatpush1.xpose.msra.mxu0 0.0
    %1341 = vmatprep.subr.mxu0 0.0
    %1342 = vmatpush1.xpose.msra.mxu0 0.0
    %1343 = vmatprep.mubr.f32.mxu0 0.0
    %1344 = vmatmul.mubr.f32.gmra.mrb[0].mxu0 %v1274
    %v1345 = vpop.f32.mrb[0].mxu0
    %v1346 = vadd.f32 0.0, %v1345
    %v1347 = vpop.f32.mrb[0].mxu0
    %1348 = vdwg.mxu0
    %v1350 = vsel %vm1044, %v448, 0
    %v1353 = vsel %vm1044, %v744, 0
    %1355 = vmatprep.subr.mxu0 0.0
    %1356 = vmatpush1.xpose.msra.mxu0 %v1353
    %1357 = vmatprep.subr.mxu0 0.0
    %1358 = vmatpush1.xpose.msra.mxu0 0.0
    %1359 = vmatprep.subr.mxu0 0.0
    %1360 = vmatpush1.xpose.msra.mxu0 0.0
    %1361 = vmatprep.subr.mxu0 0.0
    %1362 = vmatpush1.xpose.msra.mxu0 0.0
    %1363 = vmatprep.subr.mxu0 0.0
    %1364 = vmatpush1.xpose.msra.mxu0 0.0
    %1365 = vmatprep.subr.mxu0 0.0
    %1366 = vmatpush1.xpose.msra.mxu0 0.0
    %1367 = vmatprep.subr.mxu0 0.0
    %1368 = vmatpush1.xpose.msra.mxu0 0.0
    %1369 = vmatprep.subr.mxu0 0.0
    %1370 = vmatpush1.xpose.msra.mxu0 0.0
    %1371 = vmatprep.subr.mxu0 0.0
    %1372 = vmatpush1.xpose.msra.mxu0 0.0
    %1373 = vmatprep.subr.mxu0 0.0
    %1374 = vmatpush1.xpose.msra.mxu0 0.0
    %1375 = vmatprep.subr.mxu0 0.0
    %1376 = vmatpush1.xpose.msra.mxu0 0.0
    %1377 = vmatprep.subr.mxu0 0.0
    %1378 = vmatpush1.xpose.msra.mxu0 0.0
    %1379 = vmatprep.subr.mxu0 0.0
    %1380 = vmatpush1.xpose.msra.mxu0 0.0
    %1381 = vmatprep.subr.mxu0 0.0
    %1382 = vmatpush1.xpose.msra.mxu0 0.0
    %1383 = vmatprep.subr.mxu0 0.0
    %1384 = vmatpush1.xpose.msra.mxu0 0.0
    %1385 = vmatprep.subr.mxu0 0.0
    %1386 = vmatpush1.xpose.msra.mxu0 0.0
    %1387 = vmatprep.subr.mxu0 0.0
    %1388 = vmatpush1.xpose.msra.mxu0 0.0
    %1389 = vmatprep.subr.mxu0 0.0
    %1390 = vmatpush1.xpose.msra.mxu0 0.0
    %1391 = vmatprep.subr.mxu0 0.0
    %1392 = vmatpush1.xpose.msra.mxu0 0.0
    %1393 = vmatprep.subr.mxu0 0.0
    %1394 = vmatpush1.xpose.msra.mxu0 0.0
    %1395 = vmatprep.subr.mxu0 0.0
    %1396 = vmatpush1.xpose.msra.mxu0 0.0
    %1397 = vmatprep.subr.mxu0 0.0
    %1398 = vmatpush1.xpose.msra.mxu0 0.0
    %1399 = vmatprep.subr.mxu0 0.0
    %1400 = vmatpush1.xpose.msra.mxu0 0.0
    %1401 = vmatprep.subr.mxu0 0.0
    %1402 = vmatpush1.xpose.msra.mxu0 0.0
    %1403 = vmatprep.subr.mxu0 0.0
    %1404 = vmatpush1.xpose.msra.mxu0 0.0
    %1405 = vmatprep.subr.mxu0 0.0
    %1406 = vmatpush1.xpose.msra.mxu0 0.0
    %1407 = vmatprep.subr.mxu0 0.0
    %1408 = vmatpush1.xpose.msra.mxu0 0.0
    %1409 = vmatprep.subr.mxu0 0.0
    %1410 = vmatpush1.xpose.msra.mxu0 0.0
    %1411 = vmatprep.subr.mxu0 0.0
    %1412 = vmatpush1.xpose.msra.mxu0 0.0
    %1413 = vmatprep.subr.mxu0 0.0
    %1414 = vmatpush1.xpose.msra.mxu0 0.0
    %1415 = vmatprep.subr.mxu0 0.0
    %1416 = vmatpush1.xpose.msra.mxu0 0.0
    %1417 = vmatprep.subr.mxu0 0.0
    %1418 = vmatpush1.xpose.msra.mxu0 0.0
    %1419 = vmatprep.mubr.f32.mxu0 0.0
    %1420 = vmatmul.mubr.f32.gmra.mrb[0].mxu0 %v1350
    %v1421 = vpop.f32.mrb[0].mxu0
    %v1422 = vadd.f32 0.0, %v1421
    %v1423 = vpop.f32.mrb[0].mxu0
    %1424 = vdwg.mxu0
    %v1426 = vsel %vm1044, %v449, 0
    %v1429 = vsel %vm1044, %v745, 0
    %1431 = vmatprep.subr.mxu0 0.0
    %1432 = vmatpush1.xpose.msra.mxu0 %v1429
    %1433 = vmatprep.subr.mxu0 0.0
    %1434 = vmatpush1.xpose.msra.mxu0 0.0
    %1435 = vmatprep.subr.mxu0 0.0
    %1436 = vmatpush1.xpose.msra.mxu0 0.0
    %1437 = vmatprep.subr.mxu0 0.0
    %1438 = vmatpush1.xpose.msra.mxu0 0.0
    %1439 = vmatprep.subr.mxu0 0.0
    %1440 = vmatpush1.xpose.msra.mxu0 0.0
    %1441 = vmatprep.subr.mxu0 0.0
    %1442 = vmatpush1.xpose.msra.mxu0 0.0
    %1443 = vmatprep.subr.mxu0 0.0
    %1444 = vmatpush1.xpose.msra.mxu0 0.0
    %1445 = vmatprep.subr.mxu0 0.0
    %1446 = vmatpush1.xpose.msra.mxu0 0.0
    %1447 = vmatprep.subr.mxu0 0.0
    %1448 = vmatpush1.xpose.msra.mxu0 0.0
    %1449 = vmatprep.subr.mxu0 0.0
    %1450 = vmatpush1.xpose.msra.mxu0 0.0
    %1451 = vmatprep.subr.mxu0 0.0
    %1452 = vmatpush1.xpose.msra.mxu0 0.0
    %1453 = vmatprep.subr.mxu0 0.0
    %1454 = vmatpush1.xpose.msra.mxu0 0.0
    %1455 = vmatprep.subr.mxu0 0.0
    %1456 = vmatpush1.xpose.msra.mxu0 0.0
    %1457 = vmatprep.subr.mxu0 0.0
    %1458 = vmatpush1.xpose.msra.mxu0 0.0
    %1459 = vmatprep.subr.mxu0 0.0
    %1460 = vmatpush1.xpose.msra.mxu0 0.0
    %1461 = vmatprep.subr.mxu0 0.0
    %1462 = vmatpush1.xpose.msra.mxu0 0.0
    %1463 = vmatprep.subr.mxu0 0.0
    %1464 = vmatpush1.xpose.msra.mxu0 0.0
    %1465 = vmatprep.subr.mxu0 0.0
    %1466 = vmatpush1.xpose.msra.mxu0 0.0
    %1467 = vmatprep.subr.mxu0 0.0
    %1468 = vmatpush1.xpose.msra.mxu0 0.0
    %1469 = vmatprep.subr.mxu0 0.0
    %1470 = vmatpush1.xpose.msra.mxu0 0.0
    %1471 = vmatprep.subr.mxu0 0.0
    %1472 = vmatpush1.xpose.msra.mxu0 0.0
    %1473 = vmatprep.subr.mxu0 0.0
    %1474 = vmatpush1.xpose.msra.mxu0 0.0
    %1475 = vmatprep.subr.mxu0 0.0
    %1476 = vmatpush1.xpose.msra.mxu0 0.0
    %1477 = vmatprep.subr.mxu0 0.0
    %1478 = vmatpush1.xpose.msra.mxu0 0.0
    %1479 = vmatprep.subr.mxu0 0.0
    %1480 = vmatpush1.xpose.msra.mxu0 0.0
    %1481 = vmatprep.subr.mxu0 0.0
    %1482 = vmatpush1.xpose.msra.mxu0 0.0
    %1483 = vmatprep.subr.mxu0 0.0
    %1484 = vmatpush1.xpose.msra.mxu0 0.0
    %1485 = vmatprep.subr.mxu0 0.0
    %1486 = vmatpush1.xpose.msra.mxu0 0.0
    %1487 = vmatprep.subr.mxu0 0.0
    %1488 = vmatpush1.xpose.msra.mxu0 0.0
    %1489 = vmatprep.subr.mxu0 0.0
    %1490 = vmatpush1.xpose.msra.mxu0 0.0
    %1491 = vmatprep.subr.mxu0 0.0
    %1492 = vmatpush1.xpose.msra.mxu0 0.0
    %1493 = vmatprep.subr.mxu0 0.0
    %1494 = vmatpush1.xpose.msra.mxu0 0.0
    %1495 = vmatprep.mubr.f32.mxu0 0.0
    %1496 = vmatmul.mubr.f32.gmra.mrb[0].mxu0 %v1426
    %v1497 = vpop.f32.mrb[0].mxu0
    %v1498 = vadd.f32 0.0, %v1497
    %v1499 = vpop.f32.mrb[0].mxu0
    %1500 = vdwg.mxu0
    %v1502 = vsel %vm1044, %v450, 0
    %v1505 = vsel %vm1044, %v746, 0
    %1507 = vmatprep.subr.mxu0 0.0
    %1508 = vmatpush1.xpose.msra.mxu0 %v1505
    %1509 = vmatprep.subr.mxu0 0.0
    %1510 = vmatpush1.xpose.msra.mxu0 0.0
    %1511 = vmatprep.subr.mxu0 0.0
    %1512 = vmatpush1.xpose.msra.mxu0 0.0
    %1513 = vmatprep.subr.mxu0 0.0
    %1514 = vmatpush1.xpose.msra.mxu0 0.0
    %1515 = vmatprep.subr.mxu0 0.0
    %1516 = vmatpush1.xpose.msra.mxu0 0.0
    %1517 = vmatprep.subr.mxu0 0.0
    %1518 = vmatpush1.xpose.msra.mxu0 0.0
    %1519 = vmatprep.subr.mxu0 0.0
    %1520 = vmatpush1.xpose.msra.mxu0 0.0
    %1521 = vmatprep.subr.mxu0 0.0
    %1522 = vmatpush1.xpose.msra.mxu0 0.0
    %1523 = vmatprep.subr.mxu0 0.0
    %1524 = vmatpush1.xpose.msra.mxu0 0.0
    %1525 = vmatprep.subr.mxu0 0.0
    %1526 = vmatpush1.xpose.msra.mxu0 0.0
    %1527 = vmatprep.subr.mxu0 0.0
    %1528 = vmatpush1.xpose.msra.mxu0 0.0
    %1529 = vmatprep.subr.mxu0 0.0
    %1530 = vmatpush1.xpose.msra.mxu0 0.0
    %1531 = vmatprep.subr.mxu0 0.0
    %1532 = vmatpush1.xpose.msra.mxu0 0.0
    %1533 = vmatprep.subr.mxu0 0.0
    %1534 = vmatpush1.xpose.msra.mxu0 0.0
    %1535 = vmatprep.subr.mxu0 0.0
    %1536 = vmatpush1.xpose.msra.mxu0 0.0
    %1537 = vmatprep.subr.mxu0 0.0
    %1538 = vmatpush1.xpose.msra.mxu0 0.0
    %1539 = vmatprep.subr.mxu0 0.0
    %1540 = vmatpush1.xpose.msra.mxu0 0.0
    %1541 = vmatprep.subr.mxu0 0.0
    %1542 = vmatpush1.xpose.msra.mxu0 0.0
    %1543 = vmatprep.subr.mxu0 0.0
    %1544 = vmatpush1.xpose.msra.mxu0 0.0
    %1545 = vmatprep.subr.mxu0 0.0
    %1546 = vmatpush1.xpose.msra.mxu0 0.0
    %1547 = vmatprep.subr.mxu0 0.0
    %1548 = vmatpush1.xpose.msra.mxu0 0.0
    %1549 = vmatprep.subr.mxu0 0.0
    %1550 = vmatpush1.xpose.msra.mxu0 0.0
    %1551 = vmatprep.subr.mxu0 0.0
    %1552 = vmatpush1.xpose.msra.mxu0 0.0
    %1553 = vmatprep.subr.mxu0 0.0
    %1554 = vmatpush1.xpose.msra.mxu0 0.0
    %1555 = vmatprep.subr.mxu0 0.0
    %1556 = vmatpush1.xpose.msra.mxu0 0.0
    %1557 = vmatprep.subr.mxu0 0.0
    %1558 = vmatpush1.xpose.msra.mxu0 0.0
    %1559 = vmatprep.subr.mxu0 0.0
    %1560 = vmatpush1.xpose.msra.mxu0 0.0
    %1561 = vmatprep.subr.mxu0 0.0
    %1562 = vmatpush1.xpose.msra.mxu0 0.0
    %1563 = vmatprep.subr.mxu0 0.0
    %1564 = vmatpush1.xpose.msra.mxu0 0.0
    %1565 = vmatprep.subr.mxu0 0.0
    %1566 = vmatpush1.xpose.msra.mxu0 0.0
    %1567 = vmatprep.subr.mxu0 0.0
    %1568 = vmatpush1.xpose.msra.mxu0 0.0
    %1569 = vmatprep.subr.mxu0 0.0
    %1570 = vmatpush1.xpose.msra.mxu0 0.0
    %1571 = vmatprep.mubr.f32.mxu0 0.0
    %1572 = vmatmul.mubr.f32.gmra.mrb[0].mxu0 %v1502
    %v1573 = vpop.f32.mrb[0].mxu0
    %v1574 = vadd.f32 0.0, %v1573
    %v1575 = vpop.f32.mrb[0].mxu0
    %1576 = vdwg.mxu0
    %v1578 = vsel %vm1044, %v451, 0
    %v1581 = vsel %vm1044, %v747, 0
    %1583 = vmatprep.subr.mxu0 0.0
    %1584 = vmatpush1.xpose.msra.mxu0 %v1581
    %1585 = vmatprep.subr.mxu0 0.0
    %1586 = vmatpush1.xpose.msra.mxu0 0.0
    %1587 = vmatprep.subr.mxu0 0.0
    %1588 = vmatpush1.xpose.msra.mxu0 0.0
    %1589 = vmatprep.subr.mxu0 0.0
    %1590 = vmatpush1.xpose.msra.mxu0 0.0
    %1591 = vmatprep.subr.mxu0 0.0
    %1592 = vmatpush1.xpose.msra.mxu0 0.0
    %1593 = vmatprep.subr.mxu0 0.0
    %1594 = vmatpush1.xpose.msra.mxu0 0.0
    %1595 = vmatprep.subr.mxu0 0.0
    %1596 = vmatpush1.xpose.msra.mxu0 0.0
    %1597 = vmatprep.subr.mxu0 0.0
    %1598 = vmatpush1.xpose.msra.mxu0 0.0
    %1599 = vmatprep.subr.mxu0 0.0
    %1600 = vmatpush1.xpose.msra.mxu0 0.0
    %1601 = vmatprep.subr.mxu0 0.0
    %1602 = vmatpush1.xpose.msra.mxu0 0.0
    %1603 = vmatprep.subr.mxu0 0.0
    %1604 = vmatpush1.xpose.msra.mxu0 0.0
    %1605 = vmatprep.subr.mxu0 0.0
    %1606 = vmatpush1.xpose.msra.mxu0 0.0
    %1607 = vmatprep.subr.mxu0 0.0
    %1608 = vmatpush1.xpose.msra.mxu0 0.0
    %1609 = vmatprep.subr.mxu0 0.0
    %1610 = vmatpush1.xpose.msra.mxu0 0.0
    %1611 = vmatprep.subr.mxu0 0.0
    %1612 = vmatpush1.xpose.msra.mxu0 0.0
    %1613 = vmatprep.subr.mxu0 0.0
    %1614 = vmatpush1.xpose.msra.mxu0 0.0
    %1615 = vmatprep.subr.mxu0 0.0
    %1616 = vmatpush1.xpose.msra.mxu0 0.0
    %1617 = vmatprep.subr.mxu0 0.0
    %1618 = vmatpush1.xpose.msra.mxu0 0.0
    %1619 = vmatprep.subr.mxu0 0.0
    %1620 = vmatpush1.xpose.msra.mxu0 0.0
    %1621 = vmatprep.subr.mxu0 0.0
    %1622 = vmatpush1.xpose.msra.mxu0 0.0
    %1623 = vmatprep.subr.mxu0 0.0
    %1624 = vmatpush1.xpose.msra.mxu0 0.0
    %1625 = vmatprep.subr.mxu0 0.0
    %1626 = vmatpush1.xpose.msra.mxu0 0.0
    %1627 = vmatprep.subr.mxu0 0.0
    %1628 = vmatpush1.xpose.msra.mxu0 0.0
    %1629 = vmatprep.subr.mxu0 0.0
    %1630 = vmatpush1.xpose.msra.mxu0 0.0
    %1631 = vmatprep.subr.mxu0 0.0
    %1632 = vmatpush1.xpose.msra.mxu0 0.0
    %1633 = vmatprep.subr.mxu0 0.0
    %1634 = vmatpush1.xpose.msra.mxu0 0.0
    %1635 = vmatprep.subr.mxu0 0.0
    %1636 = vmatpush1.xpose.msra.mxu0 0.0
    %1637 = vmatprep.subr.mxu0 0.0
    %1638 = vmatpush1.xpose.msra.mxu0 0.0
    %1639 = vmatprep.subr.mxu0 0.0
    %1640 = vmatpush1.xpose.msra.mxu0 0.0
    %1641 = vmatprep.subr.mxu0 0.0
    %1642 = vmatpush1.xpose.msra.mxu0 0.0
    %1643 = vmatprep.subr.mxu0 0.0
    %1644 = vmatpush1.xpose.msra.mxu0 0.0
    %1645 = vmatprep.subr.mxu0 0.0
    %1646 = vmatpush1.xpose.msra.mxu0 0.0
    %1647 = vmatprep.mubr.f32.mxu0 0.0
    %1648 = vmatmul.mubr.f32.gmra.mrb[0].mxu0 %v1578
    %v1649 = vpop.f32.mrb[0].mxu0
    %v1650 = vadd.f32 0.0, %v1649
    %v1651 = vpop.f32.mrb[0].mxu0
    %1652 = vdwg.mxu0
    %v1653 = vsel %vm1044, %v1118, -inf
    %1654 = vmax.xlane.f32.xlu0 %v1653
    %v1655 = vpop.xlane.xlu0 %1654
    %v1656 = vsel %vm1044, %v1194, -inf
    %1657 = vmax.xlane.f32.xlu0 %v1656
    %v1658 = vpop.xlane.xlu0 %1657
    %v1659 = vsel %vm1044, %v1270, -inf
    %1660 = vmax.xlane.f32.xlu0 %v1659
    %v1661 = vpop.xlane.xlu0 %1660
    %v1662 = vsel %vm1044, %v1346, -inf
    %1663 = vmax.xlane.f32.xlu0 %v1662
    %v1664 = vpop.xlane.xlu0 %1663
    %v1665 = vsel %vm1044, %v1422, -inf
    %1666 = vmax.xlane.f32.xlu0 %v1665
    %v1667 = vpop.xlane.xlu0 %1666
    %v1668 = vsel %vm1044, %v1498, -inf
    %1669 = vmax.xlane.f32.xlu0 %v1668
    %v1670 = vpop.xlane.xlu0 %1669
    %v1671 = vsel %vm1044, %v1574, -inf
    %1672 = vmax.xlane.f32.xlu0 %v1671
    %v1673 = vpop.xlane.xlu0 %1672
    %v1674 = vsel %vm1044, %v1650, -inf
    %1675 = vmax.xlane.f32.xlu0 %v1674
    %v1676 = vpop.xlane.xlu0 %1675
    %v1677 = vsub.f32 %v1118, %v1655
    %v1678 = vsub.f32 %v1194, %v1658
    %v1679 = vsub.f32 %v1270, %v1661
    %v1680 = vsub.f32 %v1346, %v1664
    %v1681 = vsub.f32 %v1422, %v1667
    %v1682 = vsub.f32 %v1498, %v1670
    %v1683 = vsub.f32 %v1574, %v1673
    %v1684 = vsub.f32 %v1650, %v1676
    %v1685 = vmul.f32 %v1677, 1.442695
    %v1686 = vpow.pop %v1685
    %v1687 = vmul.f32 %v1678, 1.442695
    %v1688 = vpow.pop %v1687
    %v1689 = vmul.f32 %v1679, 1.442695
    %v1690 = vpow.pop %v1689
    %v1691 = vmul.f32 %v1680, 1.442695
    %v1692 = vpow.pop %v1691
    %v1693 = vmul.f32 %v1681, 1.442695
    %v1694 = vpow.pop %v1693
    %v1695 = vmul.f32 %v1682, 1.442695
    %v1696 = vpow.pop %v1695
    %v1697 = vmul.f32 %v1683, 1.442695
    %v1698 = vpow.pop %v1697
    %v1699 = vmul.f32 %v1684, 1.442695
    %v1700 = vpow.pop %v1699
    %v1701 = vsel %vm1044, %v1686, 0.0
    %1702 = vadd.xlane.f32.xlu0 %v1701
    %v1703 = vpop.xlane.xlu0 %1702
    %v1704 = vsel %vm1044, %v1688, 0.0
    %1705 = vadd.xlane.f32.xlu0 %v1704
    %v1706 = vpop.xlane.xlu0 %1705
    %v1707 = vsel %vm1044, %v1690, 0.0
    %1708 = vadd.xlane.f32.xlu0 %v1707
    %v1709 = vpop.xlane.xlu0 %1708
    %v1710 = vsel %vm1044, %v1692, 0.0
    %1711 = vadd.xlane.f32.xlu0 %v1710
    %v1712 = vpop.xlane.xlu0 %1711
    %v1713 = vsel %vm1044, %v1694, 0.0
    %1714 = vadd.xlane.f32.xlu0 %v1713
    %v1715 = vpop.xlane.xlu0 %1714
    %v1716 = vsel %vm1044, %v1696, 0.0
    %1717 = vadd.xlane.f32.xlu0 %v1716
    %v1718 = vpop.xlane.xlu0 %1717
    %v1719 = vsel %vm1044, %v1698, 0.0
    %1720 = vadd.xlane.f32.xlu0 %v1719
    %v1721 = vpop.xlane.xlu0 %1720
    %v1722 = vsel %vm1044, %v1700, 0.0
    %1723 = vadd.xlane.f32.xlu0 %v1722
    %v1724 = vpop.xlane.xlu0 %1723
    %v1725 = vrcp.pop %v1703
    %v1726 = vrcp.pop %v1706
    %v1727 = vrcp.pop %v1709
    %v1728 = vrcp.pop %v1712
    %v1729 = vrcp.pop %v1715
    %v1730 = vrcp.pop %v1718
    %v1731 = vrcp.pop %v1721
    %v1732 = vrcp.pop %v1724
    %v1733 = vmul.f32 %v1686, %v1725
    %v1734 = vmul.f32 %v1688, %v1726
    %v1735 = vmul.f32 %v1690, %v1727
    %v1736 = vmul.f32 %v1692, %v1728
    %v1737 = vmul.f32 %v1694, %v1729
    %v1738 = vmul.f32 %v1696, %v1730
    %v1739 = vmul.f32 %v1698, %v1731
    %v1740 = vmul.f32 %v1700, %v1732
    %v1742 = vsel %vm1044, %v1733, 0
    %1744 = vmatprep.subr.mxu0 0.0
    %1745 = vmatpush1.msra.mxu0 %v972
    %1746 = vmatprep.subr.mxu0 0.0
    %1747 = vmatpush1.msra.mxu0 0.0
    %1748 = vmatprep.subr.mxu0 0.0
    %1749 = vmatpush1.msra.mxu0 0.0
    %1750 = vmatprep.subr.mxu0 0.0
    %1751 = vmatpush1.msra.mxu0 0.0
    %1752 = vmatprep.subr.mxu0 0.0
    %1753 = vmatpush1.msra.mxu0 0.0
    %1754 = vmatprep.subr.mxu0 0.0
    %1755 = vmatpush1.msra.mxu0 0.0
    %1756 = vmatprep.subr.mxu0 0.0
    %1757 = vmatpush1.msra.mxu0 0.0
    %1758 = vmatprep.subr.mxu0 0.0
    %1759 = vmatpush1.msra.mxu0 0.0
    %1760 = vmatprep.subr.mxu0 0.0
    %1761 = vmatpush1.msra.mxu0 0.0
    %1762 = vmatprep.subr.mxu0 0.0
    %1763 = vmatpush1.msra.mxu0 0.0
    %1764 = vmatprep.subr.mxu0 0.0
    %1765 = vmatpush1.msra.mxu0 0.0
    %1766 = vmatprep.subr.mxu0 0.0
    %1767 = vmatpush1.msra.mxu0 0.0
    %1768 = vmatprep.subr.mxu0 0.0
    %1769 = vmatpush1.msra.mxu0 0.0
    %1770 = vmatprep.subr.mxu0 0.0
    %1771 = vmatpush1.msra.mxu0 0.0
    %1772 = vmatprep.subr.mxu0 0.0
    %1773 = vmatpush1.msra.mxu0 0.0
    %1774 = vmatprep.subr.mxu0 0.0
    %1775 = vmatpush1.msra.mxu0 0.0
    %1776 = vmatprep.subr.mxu0 0.0
    %1777 = vmatpush1.msra.mxu0 0.0
    %1778 = vmatprep.subr.mxu0 0.0
    %1779 = vmatpush1.msra.mxu0 0.0
    %1780 = vmatprep.subr.mxu0 0.0
    %1781 = vmatpush1.msra.mxu0 0.0
    %1782 = vmatprep.subr.mxu0 0.0
    %1783 = vmatpush1.msra.mxu0 0.0
    %1784 = vmatprep.subr.mxu0 0.0
    %1785 = vmatpush1.msra.mxu0 0.0
    %1786 = vmatprep.subr.mxu0 0.0
    %1787 = vmatpush1.msra.mxu0 0.0
    %1788 = vmatprep.subr.mxu0 0.0
    %1789 = vmatpush1.msra.mxu0 0.0
    %1790 = vmatprep.subr.mxu0 0.0
    %1791 = vmatpush1.msra.mxu0 0.0
    %1792 = vmatprep.subr.mxu0 0.0
    %1793 = vmatpush1.msra.mxu0 0.0
    %1794 = vmatprep.subr.mxu0 0.0
    %1795 = vmatpush1.msra.mxu0 0.0
    %1796 = vmatprep.subr.mxu0 0.0
    %1797 = vmatpush1.msra.mxu0 0.0
    %1798 = vmatprep.subr.mxu0 0.0
    %1799 = vmatpush1.msra.mxu0 0.0
    %1800 = vmatprep.subr.mxu0 0.0
    %1801 = vmatpush1.msra.mxu0 0.0
    %1802 = vmatprep.subr.mxu0 0.0
    %1803 = vmatpush1.msra.mxu0 0.0
    %1804 = vmatprep.subr.mxu0 0.0
    %1805 = vmatpush1.msra.mxu0 0.0
    %1806 = vmatprep.subr.mxu0 0.0
    %1807 = vmatpush1.msra.mxu0 0.0
    %1808 = vmatprep.mubr.f32.mxu0 0.0
    %1809 = vmatmul.mubr.f32.gmra.mrb[0].mxu0 %v1742
    %v1810 = vpop.f32.mrb[0].mxu0
    %v1811 = vadd.f32 0.0, %v1810
    %v1812 = vpop.f32.mrb[0].mxu0
    %1813 = vdwg.mxu0
    %v1815 = vsel %vm1044, %v1734, 0
    %1817 = vmatprep.subr.mxu0 0.0
    %1818 = vmatpush1.msra.mxu0 %v973
    %1819 = vmatprep.subr.mxu0 0.0
    %1820 = vmatpush1.msra.mxu0 0.0
    %1821 = vmatprep.subr.mxu0 0.0
    %1822 = vmatpush1.msra.mxu0 0.0
    %1823 = vmatprep.subr.mxu0 0.0
    %1824 = vmatpush1.msra.mxu0 0.0
    %1825 = vmatprep.subr.mxu0 0.0
    %1826 = vmatpush1.msra.mxu0 0.0
    %1827 = vmatprep.subr.mxu0 0.0
    %1828 = vmatpush1.msra.mxu0 0.0
    %1829 = vmatprep.subr.mxu0 0.0
    %1830 = vmatpush1.msra.mxu0 0.0
    %1831 = vmatprep.subr.mxu0 0.0
    %1832 = vmatpush1.msra.mxu0 0.0
    %1833 = vmatprep.subr.mxu0 0.0
    %1834 = vmatpush1.msra.mxu0 0.0
    %1835 = vmatprep.subr.mxu0 0.0
    %1836 = vmatpush1.msra.mxu0 0.0
    %1837 = vmatprep.subr.mxu0 0.0
    %1838 = vmatpush1.msra.mxu0 0.0
    %1839 = vmatprep.subr.mxu0 0.0
    %1840 = vmatpush1.msra.mxu0 0.0
    %1841 = vmatprep.subr.mxu0 0.0
    %1842 = vmatpush1.msra.mxu0 0.0
    %1843 = vmatprep.subr.mxu0 0.0
    %1844 = vmatpush1.msra.mxu0 0.0
    %1845 = vmatprep.subr.mxu0 0.0
    %1846 = vmatpush1.msra.mxu0 0.0
    %1847 = vmatprep.subr.mxu0 0.0
    %1848 = vmatpush1.msra.mxu0 0.0
    %1849 = vmatprep.subr.mxu0 0.0
    %1850 = vmatpush1.msra.mxu0 0.0
    %1851 = vmatprep.subr.mxu0 0.0
    %1852 = vmatpush1.msra.mxu0 0.0
    %1853 = vmatprep.subr.mxu0 0.0
    %1854 = vmatpush1.msra.mxu0 0.0
    %1855 = vmatprep.subr.mxu0 0.0
    %1856 = vmatpush1.msra.mxu0 0.0
    %1857 = vmatprep.subr.mxu0 0.0
    %1858 = vmatpush1.msra.mxu0 0.0
    %1859 = vmatprep.subr.mxu0 0.0
    %1860 = vmatpush1.msra.mxu0 0.0
    %1861 = vmatprep.subr.mxu0 0.0
    %1862 = vmatpush1.msra.mxu0 0.0
    %1863 = vmatprep.subr.mxu0 0.0
    %1864 = vmatpush1.msra.mxu0 0.0
    %1865 = vmatprep.subr.mxu0 0.0
    %1866 = vmatpush1.msra.mxu0 0.0
    %1867 = vmatprep.subr.mxu0 0.0
    %1868 = vmatpush1.msra.mxu0 0.0
    %1869 = vmatprep.subr.mxu0 0.0
    %1870 = vmatpush1.msra.mxu0 0.0
    %1871 = vmatprep.subr.mxu0 0.0
    %1872 = vmatpush1.msra.mxu0 0.0
    %1873 = vmatprep.subr.mxu0 0.0
    %1874 = vmatpush1.msra.mxu0 0.0
    %1875 = vmatprep.subr.mxu0 0.0
    %1876 = vmatpush1.msra.mxu0 0.0
    %1877 = vmatprep.subr.mxu0 0.0
    %1878 = vmatpush1.msra.mxu0 0.0
    %1879 = vmatprep.subr.mxu0 0.0
    %1880 = vmatpush1.msra.mxu0 0.0
    %1881 = vmatprep.mubr.f32.mxu0 0.0
    %1882 = vmatmul.mubr.f32.gmra.mrb[0].mxu0 %v1815
    %v1883 = vpop.f32.mrb[0].mxu0
    %v1884 = vadd.f32 0.0, %v1883
    %v1885 = vpop.f32.mrb[0].mxu0
    %1886 = vdwg.mxu0
    %v1888 = vsel %vm1044, %v1735, 0
    %1890 = vmatprep.subr.mxu0 0.0
    %1891 = vmatpush1.msra.mxu0 %v974
    %1892 = vmatprep.subr.mxu0 0.0
    %1893 = vmatpush1.msra.mxu0 0.0
    %1894 = vmatprep.subr.mxu0 0.0
    %1895 = vmatpush1.msra.mxu0 0.0
    %1896 = vmatprep.subr.mxu0 0.0
    %1897 = vmatpush1.msra.mxu0 0.0
    %1898 = vmatprep.subr.mxu0 0.0
    %1899 = vmatpush1.msra.mxu0 0.0
    %1900 = vmatprep.subr.mxu0 0.0
    %1901 = vmatpush1.msra.mxu0 0.0
    %1902 = vmatprep.subr.mxu0 0.0
    %1903 = vmatpush1.msra.mxu0 0.0
    %1904 = vmatprep.subr.mxu0 0.0
    %1905 = vmatpush1.msra.mxu0 0.0
    %1906 = vmatprep.subr.mxu0 0.0
    %1907 = vmatpush1.msra.mxu0 0.0
    %1908 = vmatprep.subr.mxu0 0.0
    %1909 = vmatpush1.msra.mxu0 0.0
    %1910 = vmatprep.subr.mxu0 0.0
    %1911 = vmatpush1.msra.mxu0 0.0
    %1912 = vmatprep.subr.mxu0 0.0
    %1913 = vmatpush1.msra.mxu0 0.0
    %1914 = vmatprep.subr.mxu0 0.0
    %1915 = vmatpush1.msra.mxu0 0.0
    %1916 = vmatprep.subr.mxu0 0.0
    %1917 = vmatpush1.msra.mxu0 0.0
    %1918 = vmatprep.subr.mxu0 0.0
    %1919 = vmatpush1.msra.mxu0 0.0
    %1920 = vmatprep.subr.mxu0 0.0
    %1921 = vmatpush1.msra.mxu0 0.0
    %1922 = vmatprep.subr.mxu0 0.0
    %1923 = vmatpush1.msra.mxu0 0.0
    %1924 = vmatprep.subr.mxu0 0.0
    %1925 = vmatpush1.msra.mxu0 0.0
    %1926 = vmatprep.subr.mxu0 0.0
    %1927 = vmatpush1.msra.mxu0 0.0
    %1928 = vmatprep.subr.mxu0 0.0
    %1929 = vmatpush1.msra.mxu0 0.0
    %1930 = vmatprep.subr.mxu0 0.0
    %1931 = vmatpush1.msra.mxu0 0.0
    %1932 = vmatprep.subr.mxu0 0.0
    %1933 = vmatpush1.msra.mxu0 0.0
    %1934 = vmatprep.subr.mxu0 0.0
    %1935 = vmatpush1.msra.mxu0 0.0
    %1936 = vmatprep.subr.mxu0 0.0
    %1937 = vmatpush1.msra.mxu0 0.0
    %1938 = vmatprep.subr.mxu0 0.0
    %1939 = vmatpush1.msra.mxu0 0.0
    %1940 = vmatprep.subr.mxu0 0.0
    %1941 = vmatpush1.msra.mxu0 0.0
    %1942 = vmatprep.subr.mxu0 0.0
    %1943 = vmatpush1.msra.mxu0 0.0
    %1944 = vmatprep.subr.mxu0 0.0
    %1945 = vmatpush1.msra.mxu0 0.0
    %1946 = vmatprep.subr.mxu0 0.0
    %1947 = vmatpush1.msra.mxu0 0.0
    %1948 = vmatprep.subr.mxu0 0.0
    %1949 = vmatpush1.msra.mxu0 0.0
    %1950 = vmatprep.subr.mxu0 0.0
    %1951 = vmatpush1.msra.mxu0 0.0
    %1952 = vmatprep.subr.mxu0 0.0
    %1953 = vmatpush1.msra.mxu0 0.0
    %1954 = vmatprep.mubr.f32.mxu0 0.0
    %1955 = vmatmul.mubr.f32.gmra.mrb[0].mxu0 %v1888
    %v1956 = vpop.f32.mrb[0].mxu0
    %v1957 = vadd.f32 0.0, %v1956
    %v1958 = vpop.f32.mrb[0].mxu0
    %1959 = vdwg.mxu0
    %v1961 = vsel %vm1044, %v1736, 0
    %1963 = vmatprep.subr.mxu0 0.0
    %1964 = vmatpush1.msra.mxu0 %v975
    %1965 = vmatprep.subr.mxu0 0.0
    %1966 = vmatpush1.msra.mxu0 0.0
    %1967 = vmatprep.subr.mxu0 0.0
    %1968 = vmatpush1.msra.mxu0 0.0
    %1969 = vmatprep.subr.mxu0 0.0
    %1970 = vmatpush1.msra.mxu0 0.0
    %1971 = vmatprep.subr.mxu0 0.0
    %1972 = vmatpush1.msra.mxu0 0.0
    %1973 = vmatprep.subr.mxu0 0.0
    %1974 = vmatpush1.msra.mxu0 0.0
    %1975 = vmatprep.subr.mxu0 0.0
    %1976 = vmatpush1.msra.mxu0 0.0
    %1977 = vmatprep.subr.mxu0 0.0
    %1978 = vmatpush1.msra.mxu0 0.0
    %1979 = vmatprep.subr.mxu0 0.0
    %1980 = vmatpush1.msra.mxu0 0.0
    %1981 = vmatprep.subr.mxu0 0.0
    %1982 = vmatpush1.msra.mxu0 0.0
    %1983 = vmatprep.subr.mxu0 0.0
    %1984 = vmatpush1.msra.mxu0 0.0
    %1985 = vmatprep.subr.mxu0 0.0
    %1986 = vmatpush1.msra.mxu0 0.0
    %1987 = vmatprep.subr.mxu0 0.0
    %1988 = vmatpush1.msra.mxu0 0.0
    %1989 = vmatprep.subr.mxu0 0.0
    %1990 = vmatpush1.msra.mxu0 0.0
    %1991 = vmatprep.subr.mxu0 0.0
    %1992 = vmatpush1.msra.mxu0 0.0
    %1993 = vmatprep.subr.mxu0 0.0
    %1994 = vmatpush1.msra.mxu0 0.0
    %1995 = vmatprep.subr.mxu0 0.0
    %1996 = vmatpush1.msra.mxu0 0.0
    %1997 = vmatprep.subr.mxu0 0.0
    %1998 = vmatpush1.msra.mxu0 0.0
    %1999 = vmatprep.subr.mxu0 0.0
    %2000 = vmatpush1.msra.mxu0 0.0
    %2001 = vmatprep.subr.mxu0 0.0
    %2002 = vmatpush1.msra.mxu0 0.0
    %2003 = vmatprep.subr.mxu0 0.0
    %2004 = vmatpush1.msra.mxu0 0.0
    %2005 = vmatprep.subr.mxu0 0.0
    %2006 = vmatpush1.msra.mxu0 0.0
    %2007 = vmatprep.subr.mxu0 0.0
    %2008 = vmatpush1.msra.mxu0 0.0
    %2009 = vmatprep.subr.mxu0 0.0
    %2010 = vmatpush1.msra.mxu0 0.0
    %2011 = vmatprep.subr.mxu0 0.0
    %2012 = vmatpush1.msra.mxu0 0.0
    %2013 = vmatprep.subr.mxu0 0.0
    %2014 = vmatpush1.msra.mxu0 0.0
    %2015 = vmatprep.subr.mxu0 0.0
    %2016 = vmatpush1.msra.mxu0 0.0
    %2017 = vmatprep.subr.mxu0 0.0
    %2018 = vmatpush1.msra.mxu0 0.0
    %2019 = vmatprep.subr.mxu0 0.0
    %2020 = vmatpush1.msra.mxu0 0.0
    %2021 = vmatprep.subr.mxu0 0.0
    %2022 = vmatpush1.msra.mxu0 0.0
    %2023 = vmatprep.subr.mxu0 0.0
    %2024 = vmatpush1.msra.mxu0 0.0
    %2025 = vmatprep.subr.mxu0 0.0
    %2026 = vmatpush1.msra.mxu0 0.0
    %2027 = vmatprep.mubr.f32.mxu0 0.0
    %2028 = vmatmul.mubr.f32.gmra.mrb[0].mxu0 %v1961
    %v2029 = vpop.f32.mrb[0].mxu0
    %v2030 = vadd.f32 0.0, %v2029
    %v2031 = vpop.f32.mrb[0].mxu0
    %2032 = vdwg.mxu0
    %v2034 = vsel %vm1044, %v1737, 0
    %2036 = vmatprep.subr.mxu0 0.0
    %2037 = vmatpush1.msra.mxu0 %v1040
    %2038 = vmatprep.subr.mxu0 0.0
    %2039 = vmatpush1.msra.mxu0 0.0
    %2040 = vmatprep.subr.mxu0 0.0
    %2041 = vmatpush1.msra.mxu0 0.0
    %2042 = vmatprep.subr.mxu0 0.0
    %2043 = vmatpush1.msra.mxu0 0.0
    %2044 = vmatprep.subr.mxu0 0.0
    %2045 = vmatpush1.msra.mxu0 0.0
    %2046 = vmatprep.subr.mxu0 0.0
    %2047 = vmatpush1.msra.mxu0 0.0
    %2048 = vmatprep.subr.mxu0 0.0
    %2049 = vmatpush1.msra.mxu0 0.0
    %2050 = vmatprep.subr.mxu0 0.0
    %2051 = vmatpush1.msra.mxu0 0.0
    %2052 = vmatprep.subr.mxu0 0.0
    %2053 = vmatpush1.msra.mxu0 0.0
    %2054 = vmatprep.subr.mxu0 0.0
    %2055 = vmatpush1.msra.mxu0 0.0
    %2056 = vmatprep.subr.mxu0 0.0
    %2057 = vmatpush1.msra.mxu0 0.0
    %2058 = vmatprep.subr.mxu0 0.0
    %2059 = vmatpush1.msra.mxu0 0.0
    %2060 = vmatprep.subr.mxu0 0.0
    %2061 = vmatpush1.msra.mxu0 0.0
    %2062 = vmatprep.subr.mxu0 0.0
    %2063 = vmatpush1.msra.mxu0 0.0
    %2064 = vmatprep.subr.mxu0 0.0
    %2065 = vmatpush1.msra.mxu0 0.0
    %2066 = vmatprep.subr.mxu0 0.0
    %2067 = vmatpush1.msra.mxu0 0.0
    %2068 = vmatprep.subr.mxu0 0.0
    %2069 = vmatpush1.msra.mxu0 0.0
    %2070 = vmatprep.subr.mxu0 0.0
    %2071 = vmatpush1.msra.mxu0 0.0
    %2072 = vmatprep.subr.mxu0 0.0
    %2073 = vmatpush1.msra.mxu0 0.0
    %2074 = vmatprep.subr.mxu0 0.0
    %2075 = vmatpush1.msra.mxu0 0.0
    %2076 = vmatprep.subr.mxu0 0.0
    %2077 = vmatpush1.msra.mxu0 0.0
    %2078 = vmatprep.subr.mxu0 0.0
    %2079 = vmatpush1.msra.mxu0 0.0
    %2080 = vmatprep.subr.mxu0 0.0
    %2081 = vmatpush1.msra.mxu0 0.0
    %2082 = vmatprep.subr.mxu0 0.0
    %2083 = vmatpush1.msra.mxu0 0.0
    %2084 = vmatprep.subr.mxu0 0.0
    %2085 = vmatpush1.msra.mxu0 0.0
    %2086 = vmatprep.subr.mxu0 0.0
    %2087 = vmatpush1.msra.mxu0 0.0
    %2088 = vmatprep.subr.mxu0 0.0
    %2089 = vmatpush1.msra.mxu0 0.0
    %2090 = vmatprep.subr.mxu0 0.0
    %2091 = vmatpush1.msra.mxu0 0.0
    %2092 = vmatprep.subr.mxu0 0.0
    %2093 = vmatpush1.msra.mxu0 0.0
    %2094 = vmatprep.subr.mxu0 0.0
    %2095 = vmatpush1.msra.mxu0 0.0
    %2096 = vmatprep.subr.mxu0 0.0
    %2097 = vmatpush1.msra.mxu0 0.0
    %2098 = vmatprep.subr.mxu0 0.0
    %2099 = vmatpush1.msra.mxu0 0.0
    %2100 = vmatprep.mubr.f32.mxu0 0.0
    %2101 = vmatmul.mubr.f32.gmra.mrb[0].mxu0 %v2034
    %v2102 = vpop.f32.mrb[0].mxu0
    %v2103 = vadd.f32 0.0, %v2102
    %v2104 = vpop.f32.mrb[0].mxu0
    %2105 = vdwg.mxu0
    %v2107 = vsel %vm1044, %v1738, 0
    %2109 = vmatprep.subr.mxu0 0.0
    %2110 = vmatpush1.msra.mxu0 %v1041
    %2111 = vmatprep.subr.mxu0 0.0
    %2112 = vmatpush1.msra.mxu0 0.0
    %2113 = vmatprep.subr.mxu0 0.0
    %2114 = vmatpush1.msra.mxu0 0.0
    %2115 = vmatprep.subr.mxu0 0.0
    %2116 = vmatpush1.msra.mxu0 0.0
    %2117 = vmatprep.subr.mxu0 0.0
    %2118 = vmatpush1.msra.mxu0 0.0
    %2119 = vmatprep.subr.mxu0 0.0
    %2120 = vmatpush1.msra.mxu0 0.0
    %2121 = vmatprep.subr.mxu0 0.0
    %2122 = vmatpush1.msra.mxu0 0.0
    %2123 = vmatprep.subr.mxu0 0.0
    %2124 = vmatpush1.msra.mxu0 0.0
    %2125 = vmatprep.subr.mxu0 0.0
    %2126 = vmatpush1.msra.mxu0 0.0
    %2127 = vmatprep.subr.mxu0 0.0
    %2128 = vmatpush1.msra.mxu0 0.0
    %2129 = vmatprep.subr.mxu0 0.0
    %2130 = vmatpush1.msra.mxu0 0.0
    %2131 = vmatprep.subr.mxu0 0.0
    %2132 = vmatpush1.msra.mxu0 0.0
    %2133 = vmatprep.subr.mxu0 0.0
    %2134 = vmatpush1.msra.mxu0 0.0
    %2135 = vmatprep.subr.mxu0 0.0
    %2136 = vmatpush1.msra.mxu0 0.0
    %2137 = vmatprep.subr.mxu0 0.0
    %2138 = vmatpush1.msra.mxu0 0.0
    %2139 = vmatprep.subr.mxu0 0.0
    %2140 = vmatpush1.msra.mxu0 0.0
    %2141 = vmatprep.subr.mxu0 0.0
    %2142 = vmatpush1.msra.mxu0 0.0
    %2143 = vmatprep.subr.mxu0 0.0
    %2144 = vmatpush1.msra.mxu0 0.0
    %2145 = vmatprep.subr.mxu0 0.0
    %2146 = vmatpush1.msra.mxu0 0.0
    %2147 = vmatprep.subr.mxu0 0.0
    %2148 = vmatpush1.msra.mxu0 0.0
    %2149 = vmatprep.subr.mxu0 0.0
    %2150 = vmatpush1.msra.mxu0 0.0
    %2151 = vmatprep.subr.mxu0 0.0
    %2152 = vmatpush1.msra.mxu0 0.0
    %2153 = vmatprep.subr.mxu0 0.0
    %2154 = vmatpush1.msra.mxu0 0.0
    %2155 = vmatprep.subr.mxu0 0.0
    %2156 = vmatpush1.msra.mxu0 0.0
    %2157 = vmatprep.subr.mxu0 0.0
    %2158 = vmatpush1.msra.mxu0 0.0
    %2159 = vmatprep.subr.mxu0 0.0
    %2160 = vmatpush1.msra.mxu0 0.0
    %2161 = vmatprep.subr.mxu0 0.0
    %2162 = vmatpush1.msra.mxu0 0.0
    %2163 = vmatprep.subr.mxu0 0.0
    %2164 = vmatpush1.msra.mxu0 0.0
    %2165 = vmatprep.subr.mxu0 0.0
    %2166 = vmatpush1.msra.mxu0 0.0
    %2167 = vmatprep.subr.mxu0 0.0
    %2168 = vmatpush1.msra.mxu0 0.0
    %2169 = vmatprep.subr.mxu0 0.0
    %2170 = vmatpush1.msra.mxu0 0.0
    %2171 = vmatprep.subr.mxu0 0.0
    %2172 = vmatpush1.msra.mxu0 0.0
    %2173 = vmatprep.mubr.f32.mxu0 0.0
    %2174 = vmatmul.mubr.f32.gmra.mrb[0].mxu0 %v2107
    %v2175 = vpop.f32.mrb[0].mxu0
    %v2176 = vadd.f32 0.0, %v2175
    %v2177 = vpop.f32.mrb[0].mxu0
    %2178 = vdwg.mxu0
    %v2180 = vsel %vm1044, %v1739, 0
    %2182 = vmatprep.subr.mxu0 0.0
    %2183 = vmatpush1.msra.mxu0 %v1042
    %2184 = vmatprep.subr.mxu0 0.0
    %2185 = vmatpush1.msra.mxu0 0.0
    %2186 = vmatprep.subr.mxu0 0.0
    %2187 = vmatpush1.msra.mxu0 0.0
    %2188 = vmatprep.subr.mxu0 0.0
    %2189 = vmatpush1.msra.mxu0 0.0
    %2190 = vmatprep.subr.mxu0 0.0
    %2191 = vmatpush1.msra.mxu0 0.0
    %2192 = vmatprep.subr.mxu0 0.0
    %2193 = vmatpush1.msra.mxu0 0.0
    %2194 = vmatprep.subr.mxu0 0.0
    %2195 = vmatpush1.msra.mxu0 0.0
    %2196 = vmatprep.subr.mxu0 0.0
    %2197 = vmatpush1.msra.mxu0 0.0
    %2198 = vmatprep.subr.mxu0 0.0
    %2199 = vmatpush1.msra.mxu0 0.0
    %2200 = vmatprep.subr.mxu0 0.0
    %2201 = vmatpush1.msra.mxu0 0.0
    %2202 = vmatprep.subr.mxu0 0.0
    %2203 = vmatpush1.msra.mxu0 0.0
    %2204 = vmatprep.subr.mxu0 0.0
    %2205 = vmatpush1.msra.mxu0 0.0
    %2206 = vmatprep.subr.mxu0 0.0
    %2207 = vmatpush1.msra.mxu0 0.0
    %2208 = vmatprep.subr.mxu0 0.0
    %2209 = vmatpush1.msra.mxu0 0.0
    %2210 = vmatprep.subr.mxu0 0.0
    %2211 = vmatpush1.msra.mxu0 0.0
    %2212 = vmatprep.subr.mxu0 0.0
    %2213 = vmatpush1.msra.mxu0 0.0
    %2214 = vmatprep.subr.mxu0 0.0
    %2215 = vmatpush1.msra.mxu0 0.0
    %2216 = vmatprep.subr.mxu0 0.0
    %2217 = vmatpush1.msra.mxu0 0.0
    %2218 = vmatprep.subr.mxu0 0.0
    %2219 = vmatpush1.msra.mxu0 0.0
    %2220 = vmatprep.subr.mxu0 0.0
    %2221 = vmatpush1.msra.mxu0 0.0
    %2222 = vmatprep.subr.mxu0 0.0
    %2223 = vmatpush1.msra.mxu0 0.0
    %2224 = vmatprep.subr.mxu0 0.0
    %2225 = vmatpush1.msra.mxu0 0.0
    %2226 = vmatprep.subr.mxu0 0.0
    %2227 = vmatpush1.msra.mxu0 0.0
    %2228 = vmatprep.subr.mxu0 0.0
    %2229 = vmatpush1.msra.mxu0 0.0
    %2230 = vmatprep.subr.mxu0 0.0
    %2231 = vmatpush1.msra.mxu0 0.0
    %2232 = vmatprep.subr.mxu0 0.0
    %2233 = vmatpush1.msra.mxu0 0.0
    %2234 = vmatprep.subr.mxu0 0.0
    %2235 = vmatpush1.msra.mxu0 0.0
    %2236 = vmatprep.subr.mxu0 0.0
    %2237 = vmatpush1.msra.mxu0 0.0
    %2238 = vmatprep.subr.mxu0 0.0
    %2239 = vmatpush1.msra.mxu0 0.0
    %2240 = vmatprep.subr.mxu0 0.0
    %2241 = vmatpush1.msra.mxu0 0.0
    %2242 = vmatprep.subr.mxu0 0.0
    %2243 = vmatpush1.msra.mxu0 0.0
    %2244 = vmatprep.subr.mxu0 0.0
    %2245 = vmatpush1.msra.mxu0 0.0
    %2246 = vmatprep.mubr.f32.mxu0 0.0
    %2247 = vmatmul.mubr.f32.gmra.mrb[0].mxu0 %v2180
    %v2248 = vpop.f32.mrb[0].mxu0
    %v2249 = vadd.f32 0.0, %v2248
    %v2250 = vpop.f32.mrb[0].mxu0
    %2251 = vdwg.mxu0
    %v2253 = vsel %vm1044, %v1740, 0
    %2255 = vmatprep.subr.mxu0 0.0
    %2256 = vmatpush1.msra.mxu0 %v1043
    %2257 = vmatprep.subr.mxu0 0.0
    %2258 = vmatpush1.msra.mxu0 0.0
    %2259 = vmatprep.subr.mxu0 0.0
    %2260 = vmatpush1.msra.mxu0 0.0
    %2261 = vmatprep.subr.mxu0 0.0
    %2262 = vmatpush1.msra.mxu0 0.0
    %2263 = vmatprep.subr.mxu0 0.0
    %2264 = vmatpush1.msra.mxu0 0.0
    %2265 = vmatprep.subr.mxu0 0.0
    %2266 = vmatpush1.msra.mxu0 0.0
    %2267 = vmatprep.subr.mxu0 0.0
    %2268 = vmatpush1.msra.mxu0 0.0
    %2269 = vmatprep.subr.mxu0 0.0
    %2270 = vmatpush1.msra.mxu0 0.0
    %2271 = vmatprep.subr.mxu0 0.0
    %2272 = vmatpush1.msra.mxu0 0.0
    %2273 = vmatprep.subr.mxu0 0.0
    %2274 = vmatpush1.msra.mxu0 0.0
    %2275 = vmatprep.subr.mxu0 0.0
    %2276 = vmatpush1.msra.mxu0 0.0
    %2277 = vmatprep.subr.mxu0 0.0
    %2278 = vmatpush1.msra.mxu0 0.0
    %2279 = vmatprep.subr.mxu0 0.0
    %2280 = vmatpush1.msra.mxu0 0.0
    %2281 = vmatprep.subr.mxu0 0.0
    %2282 = vmatpush1.msra.mxu0 0.0
    %2283 = vmatprep.subr.mxu0 0.0
    %2284 = vmatpush1.msra.mxu0 0.0
    %2285 = vmatprep.subr.mxu0 0.0
    %2286 = vmatpush1.msra.mxu0 0.0
    %2287 = vmatprep.subr.mxu0 0.0
    %2288 = vmatpush1.msra.mxu0 0.0
    %2289 = vmatprep.subr.mxu0 0.0
    %2290 = vmatpush1.msra.mxu0 0.0
    %2291 = vmatprep.subr.mxu0 0.0
    %2292 = vmatpush1.msra.mxu0 0.0
    %2293 = vmatprep.subr.mxu0 0.0
    %2294 = vmatpush1.msra.mxu0 0.0
    %2295 = vmatprep.subr.mxu0 0.0
    %2296 = vmatpush1.msra.mxu0 0.0
    %2297 = vmatprep.subr.mxu0 0.0
    %2298 = vmatpush1.msra.mxu0 0.0
    %2299 = vmatprep.subr.mxu0 0.0
    %2300 = vmatpush1.msra.mxu0 0.0
    %2301 = vmatprep.subr.mxu0 0.0
    %2302 = vmatpush1.msra.mxu0 0.0
    %2303 = vmatprep.subr.mxu0 0.0
    %2304 = vmatpush1.msra.mxu0 0.0
    %2305 = vmatprep.subr.mxu0 0.0
    %2306 = vmatpush1.msra.mxu0 0.0
    %2307 = vmatprep.subr.mxu0 0.0
    %2308 = vmatpush1.msra.mxu0 0.0
    %2309 = vmatprep.subr.mxu0 0.0
    %2310 = vmatpush1.msra.mxu0 0.0
    %2311 = vmatprep.subr.mxu0 0.0
    %2312 = vmatpush1.msra.mxu0 0.0
    %2313 = vmatprep.subr.mxu0 0.0
    %2314 = vmatpush1.msra.mxu0 0.0
    %2315 = vmatprep.subr.mxu0 0.0
    %2316 = vmatpush1.msra.mxu0 0.0
    %2317 = vmatprep.subr.mxu0 0.0
    %2318 = vmatpush1.msra.mxu0 0.0
    %2319 = vmatprep.mubr.f32.mxu0 0.0
    %2320 = vmatmul.mubr.f32.gmra.mrb[0].mxu0 %v2253
    %v2321 = vpop.f32.mrb[0].mxu0
    %v2322 = vadd.f32 0.0, %v2321
    %v2323 = vpop.f32.mrb[0].mxu0
    %2324 = vdwg.mxu0
    %v2325 = vcombine.low %v1811, %v1957
    %v2326 = vcombine.high %v1811, %v1957
    %v2328 = vunpack.c.l.s4 1983009808
    %v2329 = vunpack.c.0.s8 %v2328
    %v2330 = vlaneseq
    %v2331 = vshrl.u32 %v2330, 7
    %v2332 = vsub.s32 %v2329, %v2331
    %v2333 = vrot.slane %v2325, %v2332
    %v2335 = vunpack.c.l.s4 1983009808
    %v2336 = vunpack.c.0.s8 %v2335
    %v2337 = vlaneseq
    %v2338 = vshrl.u32 %v2337, 7
    %v2339 = vsub.s32 %v2336, %v2338
    %v2340 = vrot.slane %v2326, %v2339
    %v2341 = vcombine.low %v1884, %v2030
    %v2342 = vcombine.high %v1884, %v2030
    %v2344 = vunpack.c.l.s4 1983009808
    %v2345 = vunpack.c.0.s8 %v2344
    %v2346 = vlaneseq
    %v2347 = vshrl.u32 %v2346, 7
    %v2348 = vsub.s32 %v2345, %v2347
    %v2349 = vrot.slane %v2341, %v2348
    %v2351 = vunpack.c.l.s4 1983009808
    %v2352 = vunpack.c.0.s8 %v2351
    %v2353 = vlaneseq
    %v2354 = vshrl.u32 %v2353, 7
    %v2355 = vsub.s32 %v2352, %v2354
    %v2356 = vrot.slane %v2342, %v2355
    %v2357 = vcombine.low %v2333, %v2349
    %v2358 = vcombine.high %v2333, %v2349
    %v2360 = vunpack.c.l.s4 1934713408
    %v2361 = vunpack.c.0.s8 %v2360
    %v2362 = vlaneseq
    %v2363 = vshrl.u32 %v2362, 7
    %v2364 = vsub.s32 %v2361, %v2363
    %v2365 = vrot.slane %v2357, %v2364
    %v2367 = vunpack.c.l.s4 1934713408
    %v2368 = vunpack.c.0.s8 %v2367
    %v2369 = vlaneseq
    %v2370 = vshrl.u32 %v2369, 7
    %v2371 = vsub.s32 %v2368, %v2370
    %v2372 = vrot.slane %v2358, %v2371
    %v2373 = vcombine.low %v2340, %v2356
    %v2374 = vcombine.high %v2340, %v2356
    %v2376 = vunpack.c.l.s4 1934713408
    %v2377 = vunpack.c.0.s8 %v2376
    %v2378 = vlaneseq
    %v2379 = vshrl.u32 %v2378, 7
    %v2380 = vsub.s32 %v2377, %v2379
    %v2381 = vrot.slane %v2373, %v2380
    %v2383 = vunpack.c.l.s4 1934713408
    %v2384 = vunpack.c.0.s8 %v2383
    %v2385 = vlaneseq
    %v2386 = vshrl.u32 %v2385, 7
    %v2387 = vsub.s32 %v2384, %v2386
    %v2388 = vrot.slane %v2374, %v2387
    %v2389 = vcombine.high %v2365, 0.0
    %v2390 = vcombine.high %v2372, 0.0
    %v2391 = vcombine.high %v2381, 0.0
    %v2392 = vcombine.high %v2388, 0.0
    %v2393 = vcombine.low %v2103, %v2249
    %v2394 = vcombine.high %v2103, %v2249
    %v2396 = vunpack.c.l.s4 1983009808
    %v2397 = vunpack.c.0.s8 %v2396
    %v2398 = vlaneseq
    %v2399 = vshrl.u32 %v2398, 7
    %v2400 = vsub.s32 %v2397, %v2399
    %v2401 = vrot.slane %v2393, %v2400
    %v2403 = vunpack.c.l.s4 1983009808
    %v2404 = vunpack.c.0.s8 %v2403
    %v2405 = vlaneseq
    %v2406 = vshrl.u32 %v2405, 7
    %v2407 = vsub.s32 %v2404, %v2406
    %v2408 = vrot.slane %v2394, %v2407
    %v2409 = vcombine.low %v2176, %v2322
    %v2410 = vcombine.high %v2176, %v2322
    %v2412 = vunpack.c.l.s4 1983009808
    %v2413 = vunpack.c.0.s8 %v2412
    %v2414 = vlaneseq
    %v2415 = vshrl.u32 %v2414, 7
    %v2416 = vsub.s32 %v2413, %v2415
    %v2417 = vrot.slane %v2409, %v2416
    %v2419 = vunpack.c.l.s4 1983009808
    %v2420 = vunpack.c.0.s8 %v2419
    %v2421 = vlaneseq
    %v2422 = vshrl.u32 %v2421, 7
    %v2423 = vsub.s32 %v2420, %v2422
    %v2424 = vrot.slane %v2410, %v2423
    %v2425 = vcombine.low %v2401, %v2417
    %v2426 = vcombine.high %v2401, %v2417
    %v2428 = vunpack.c.l.s4 1934713408
    %v2429 = vunpack.c.0.s8 %v2428
    %v2430 = vlaneseq
    %v2431 = vshrl.u32 %v2430, 7
    %v2432 = vsub.s32 %v2429, %v2431
    %v2433 = vrot.slane %v2425, %v2432
    %v2435 = vunpack.c.l.s4 1934713408
    %v2436 = vunpack.c.0.s8 %v2435
    %v2437 = vlaneseq
    %v2438 = vshrl.u32 %v2437, 7
    %v2439 = vsub.s32 %v2436, %v2438
    %v2440 = vrot.slane %v2426, %v2439
    %v2441 = vcombine.low %v2408, %v2424
    %v2442 = vcombine.high %v2408, %v2424
    %v2444 = vunpack.c.l.s4 1934713408
    %v2445 = vunpack.c.0.s8 %v2444
    %v2446 = vlaneseq
    %v2447 = vshrl.u32 %v2446, 7
    %v2448 = vsub.s32 %v2445, %v2447
    %v2449 = vrot.slane %v2441, %v2448
    %v2451 = vunpack.c.l.s4 1934713408
    %v2452 = vunpack.c.0.s8 %v2451
    %v2453 = vlaneseq
    %v2454 = vshrl.u32 %v2453, 7
    %v2455 = vsub.s32 %v2452, %v2454
    %v2456 = vrot.slane %v2442, %v2455
    %v2457 = vcombine.high %v2433, 0.0
    %v2458 = vcombine.high %v2440, 0.0
    %v2459 = vcombine.high %v2449, 0.0
    %v2460 = vcombine.high %v2456, 0.0
    %v2461 = vcombine.low %v2365, %v2372
    %v2463 = vunpack.c.l.s4 1983009808
    %v2464 = vunpack.c.0.s8 %v2463
    %v2465 = vlaneseq
    %v2466 = vshrl.u32 %v2465, 7
    %v2467 = vsub.s32 %v2464, %v2466
    %v2468 = vrot.slane %v2461, %v2467
    %v2469 = vcombine.low %v2389, %v2390
    %v2471 = vunpack.c.l.s4 1983009808
    %v2472 = vunpack.c.0.s8 %v2471
    %v2473 = vlaneseq
    %v2474 = vshrl.u32 %v2473, 7
    %v2475 = vsub.s32 %v2472, %v2474
    %v2476 = vrot.slane %v2469, %v2475
    %v2477 = vcombine.low %v2381, %v2388
    %v2479 = vunpack.c.l.s4 1983009808
    %v2480 = vunpack.c.0.s8 %v2479
    %v2481 = vlaneseq
    %v2482 = vshrl.u32 %v2481, 7
    %v2483 = vsub.s32 %v2480, %v2482
    %v2484 = vrot.slane %v2477, %v2483
    %v2485 = vcombine.low %v2391, %v2392
    %v2487 = vunpack.c.l.s4 1983009808
    %v2488 = vunpack.c.0.s8 %v2487
    %v2489 = vlaneseq
    %v2490 = vshrl.u32 %v2489, 7
    %v2491 = vsub.s32 %v2488, %v2490
    %v2492 = vrot.slane %v2485, %v2491
    %v2493 = vcombine.low %v2468, %v2476
    %v2494 = vcombine.high %v2468, %v2476
    %v2496 = vunpack.c.l.s4 1934713408
    %v2497 = vunpack.c.0.s8 %v2496
    %v2498 = vlaneseq
    %v2499 = vshrl.u32 %v2498, 7
    %v2500 = vsub.s32 %v2497, %v2499
    %v2501 = vrot.slane %v2493, %v2500
    %v2503 = vunpack.c.l.s4 1934713408
    %v2504 = vunpack.c.0.s8 %v2503
    %v2505 = vlaneseq
    %v2506 = vshrl.u32 %v2505, 7
    %v2507 = vsub.s32 %v2504, %v2506
    %v2508 = vrot.slane %v2494, %v2507
    %v2509 = vcombine.low %v2484, %v2492
    %v2510 = vcombine.high %v2484, %v2492
    %v2512 = vunpack.c.l.s4 1934713408
    %v2513 = vunpack.c.0.s8 %v2512
    %v2514 = vlaneseq
    %v2515 = vshrl.u32 %v2514, 7
    %v2516 = vsub.s32 %v2513, %v2515
    %v2517 = vrot.slane %v2509, %v2516
    %v2519 = vunpack.c.l.s4 1934713408
    %v2520 = vunpack.c.0.s8 %v2519
    %v2521 = vlaneseq
    %v2522 = vshrl.u32 %v2521, 7
    %v2523 = vsub.s32 %v2520, %v2522
    %v2524 = vrot.slane %v2510, %v2523
    %v2525 = vcombine.low %v2501, %v2517
    %v2526 = vcombine.high %v2501, %v2517
    %v2527 = vcombine.low %v2508, %v2524
    %v2528 = vcombine.high %v2508, %v2524
    %v2529 = vcombine.low %v2433, %v2440
    %v2531 = vunpack.c.l.s4 1983009808
    %v2532 = vunpack.c.0.s8 %v2531
    %v2533 = vlaneseq
    %v2534 = vshrl.u32 %v2533, 7
    %v2535 = vsub.s32 %v2532, %v2534
    %v2536 = vrot.slane %v2529, %v2535
    %v2537 = vcombine.low %v2457, %v2458
    %v2539 = vunpack.c.l.s4 1983009808
    %v2540 = vunpack.c.0.s8 %v2539
    %v2541 = vlaneseq
    %v2542 = vshrl.u32 %v2541, 7
    %v2543 = vsub.s32 %v2540, %v2542
    %v2544 = vrot.slane %v2537, %v2543
    %v2545 = vcombine.low %v2449, %v2456
    %v2547 = vunpack.c.l.s4 1983009808
    %v2548 = vunpack.c.0.s8 %v2547
    %v2549 = vlaneseq
    %v2550 = vshrl.u32 %v2549, 7
    %v2551 = vsub.s32 %v2548, %v2550
    %v2552 = vrot.slane %v2545, %v2551
    %v2553 = vcombine.low %v2459, %v2460
    %v2555 = vunpack.c.l.s4 1983009808
    %v2556 = vunpack.c.0.s8 %v2555
    %v2557 = vlaneseq
    %v2558 = vshrl.u32 %v2557, 7
    %v2559 = vsub.s32 %v2556, %v2558
    %v2560 = vrot.slane %v2553, %v2559
    %v2561 = vcombine.low %v2536, %v2544
    %v2562 = vcombine.high %v2536, %v2544
    %v2564 = vunpack.c.l.s4 1934713408
    %v2565 = vunpack.c.0.s8 %v2564
    %v2566 = vlaneseq
    %v2567 = vshrl.u32 %v2566, 7
    %v2568 = vsub.s32 %v2565, %v2567
    %v2569 = vrot.slane %v2561, %v2568
    %v2571 = vunpack.c.l.s4 1934713408
    %v2572 = vunpack.c.0.s8 %v2571
    %v2573 = vlaneseq
    %v2574 = vshrl.u32 %v2573, 7
    %v2575 = vsub.s32 %v2572, %v2574
    %v2576 = vrot.slane %v2562, %v2575
    %v2577 = vcombine.low %v2552, %v2560
    %v2578 = vcombine.high %v2552, %v2560
    %v2580 = vunpack.c.l.s4 1934713408
    %v2581 = vunpack.c.0.s8 %v2580
    %v2582 = vlaneseq
    %v2583 = vshrl.u32 %v2582, 7
    %v2584 = vsub.s32 %v2581, %v2583
    %v2585 = vrot.slane %v2577, %v2584
    %v2587 = vunpack.c.l.s4 1934713408
    %v2588 = vunpack.c.0.s8 %v2587
    %v2589 = vlaneseq
    %v2590 = vshrl.u32 %v2589, 7
    %v2591 = vsub.s32 %v2588, %v2590
    %v2592 = vrot.slane %v2578, %v2591
    %v2593 = vcombine.low %v2569, %v2585
    %v2594 = vcombine.high %v2569, %v2585
    %v2595 = vcombine.low %v2576, %v2592
    %v2596 = vcombine.high %v2576, %v2592
    %2599 = vrot.lane.b32.xlu0 %v2526, 8
    %v2600 = vpop.permute.xlu0 %2599
    %2601 = vrot.lane.b32.xlu0 %v2594, 8
    %v2602 = vpop.permute.xlu0 %2601
    %2607 = vrot.lane.b32.xlu0 %v2527, 16
    %v2608 = vpop.permute.xlu0 %2607
    %2609 = vrot.lane.b32.xlu0 %v2595, 16
    %v2610 = vpop.permute.xlu0 %2609
    %2615 = vrot.lane.b32.xlu0 %v2528, 24
    %v2616 = vpop.permute.xlu0 %2615
    %2617 = vrot.lane.b32.xlu0 %v2596, 24
    %v2618 = vpop.permute.xlu0 %2617
    %v2621 = vsel %vm1044, %v2525, %v2600
    %v2622 = vsel %vm1044, %v2593, %v2602
    %vm2623 = vcmask 130048
    %v2624 = vsel %vm2623, %v2621, %v2608
    %v2625 = vsel %vm2623, %v2622, %v2610
    %vm2626 = vcmask 195584
    %v2627 = vsel %vm2626, %v2624, %v2616
    %v2628 = vsel %vm2626, %v2625, %v2618
    %v2629 = vld [vmem:[#allocation7] sm:$0xff]
    %v2630 = vld [vmem:[#allocation7 + $0x8] sm:$0xff]
    %v2631 = vld [vmem:[#allocation7 + $0x10] sm:$0xff]
    %v2632 = vld [vmem:[#allocation7 + $0x18] sm:$0xff]
    %v2633 = vld [vmem:[%s4] sm:$0x1]
    %v2635 = vlaneseq
    %v2636 = vshrl.u32 %v2635, 7
    %v2637 = vsub.s32 0, %v2636
    %v2638 = vrot.slane %v2633, %v2637
    %v2641 = vsel %vm78, %v2627, 0
    %v2644 = vsel %vm78, %v2628, 0
    %2646 = vmatprep.subr.mxu0 0.0
    %2647 = vmatpush1.msra.mxu0 %v2629
    %2648 = vmatprep.subr.mxu0 0.0
    %2649 = vmatpush1.msra.mxu0 %v2630
    %2650 = vmatprep.subr.mxu0 0.0
    %2651 = vmatpush1.msra.mxu0 %v2631
    %2652 = vmatprep.subr.mxu0 0.0
    %2653 = vmatpush1.msra.mxu0 %v2632
    %2654 = vmatprep.subr.mxu0 0.0
    %2655 = vmatpush1.msra.mxu0 0.0
    %2656 = vmatprep.subr.mxu0 0.0
    %2657 = vmatpush1.msra.mxu0 0.0
    %2658 = vmatprep.subr.mxu0 0.0
    %2659 = vmatpush1.msra.mxu0 0.0
    %2660 = vmatprep.subr.mxu0 0.0
    %2661 = vmatpush1.msra.mxu0 0.0
    %2662 = vmatprep.subr.mxu0 0.0
    %2663 = vmatpush1.msra.mxu0 0.0
    %2664 = vmatprep.subr.mxu0 0.0
    %2665 = vmatpush1.msra.mxu0 0.0
    %2666 = vmatprep.subr.mxu0 0.0
    %2667 = vmatpush1.msra.mxu0 0.0
    %2668 = vmatprep.subr.mxu0 0.0
    %2669 = vmatpush1.msra.mxu0 0.0
    %2670 = vmatprep.subr.mxu0 0.0
    %2671 = vmatpush1.msra.mxu0 0.0
    %2672 = vmatprep.subr.mxu0 0.0
    %2673 = vmatpush1.msra.mxu0 0.0
    %2674 = vmatprep.subr.mxu0 0.0
    %2675 = vmatpush1.msra.mxu0 0.0
    %2676 = vmatprep.subr.mxu0 0.0
    %2677 = vmatpush1.msra.mxu0 0.0
    %2678 = vmatprep.subr.mxu0 0.0
    %2679 = vmatpush1.msra.mxu0 0.0
    %2680 = vmatprep.subr.mxu0 0.0
    %2681 = vmatpush1.msra.mxu0 0.0
    %2682 = vmatprep.subr.mxu0 0.0
    %2683 = vmatpush1.msra.mxu0 0.0
    %2684 = vmatprep.subr.mxu0 0.0
    %2685 = vmatpush1.msra.mxu0 0.0
    %2686 = vmatprep.subr.mxu0 0.0
    %2687 = vmatpush1.msra.mxu0 0.0
    %2688 = vmatprep.subr.mxu0 0.0
    %2689 = vmatpush1.msra.mxu0 0.0
    %2690 = vmatprep.subr.mxu0 0.0
    %2691 = vmatpush1.msra.mxu0 0.0
    %2692 = vmatprep.subr.mxu0 0.0
    %2693 = vmatpush1.msra.mxu0 0.0
    %2694 = vmatprep.subr.mxu0 0.0
    %2695 = vmatpush1.msra.mxu0 0.0
    %2696 = vmatprep.subr.mxu0 0.0
    %2697 = vmatpush1.msra.mxu0 0.0
    %2698 = vmatprep.subr.mxu0 0.0
    %2699 = vmatpush1.msra.mxu0 0.0
    %2700 = vmatprep.subr.mxu0 0.0
    %2701 = vmatpush1.msra.mxu0 0.0
    %2702 = vmatprep.subr.mxu0 0.0
    %2703 = vmatpush1.msra.mxu0 0.0
    %2704 = vmatprep.subr.mxu0 0.0
    %2705 = vmatpush1.msra.mxu0 0.0
    %2706 = vmatprep.subr.mxu0 0.0
    %2707 = vmatpush1.msra.mxu0 0.0
    %2708 = vmatprep.subr.mxu0 0.0
    %2709 = vmatpush1.msra.mxu0 0.0
    %2710 = vmatprep.mubr.f32.mxu0 0.0
    %2711 = vmatmul.mubr.f32.gmra.mrb[0].mxu0 %v2641
    %v2712 = vpop.f32.mrb[0].mxu0
    %v2713 = vadd.f32 %v2638, %v2712
    %v2714 = vpop.f32.mrb[0].mxu0
    %2715 = vmatprep.mubr.f32.mxu0 0.0
    %2716 = vmatmul.mubr.f32.gmra.mrb[0].mxu0 %v2644
    %v2717 = vpop.f32.mrb[0].mxu0
    %v2718 = vadd.f32 %v2638, %v2717
    %v2719 = vpop.f32.mrb[0].mxu0
    %2720 = vdwg.mxu0
    %2721 = vst.msk [vmem:[#allocation8] sm:$0xff] %vm78, %v2713
    %2722 = vst.msk [vmem:[#allocation8 + $0x8] sm:$0xff] %vm78, %v2718
    %v2723 = vsel %vm1044, %v1733, 0.0
    %v2724 = vsel %vm1044, %v1734, 0.0
    %v2725 = vadd.f32 %v2723, %v2724
    %v2726 = vsel %vm1044, %v1735, 0.0
    %v2727 = vadd.f32 %v2725, %v2726
    %v2728 = vsel %vm1044, %v1736, 0.0
    %v2729 = vadd.f32 %v2727, %v2728
    %v2730 = vsel %vm1044, %v1737, 0.0
    %v2731 = vsel %vm1044, %v1738, 0.0
    %v2732 = vadd.f32 %v2730, %v2731
    %v2733 = vsel %vm1044, %v1739, 0.0
    %v2734 = vadd.f32 %v2732, %v2733
    %v2735 = vsel %vm1044, %v1740, 0.0
    %v2736 = vadd.f32 %v2734, %v2735
    %v2737 = vrcp.pop 4.0
    %v2738 = vmul.f32 %v2729, %v2737
    %v2739 = vmul.f32 %v2736, %v2737
    %2740 = vst.msk [vmem:[#allocation9] sm:$0xff] %vm1044, %v2738
    %2741 = vst.msk [vmem:[#allocation9 + $0x8] sm:$0xff] %vm1044, %v2739
    // Predicated region
    $region34: #{multihead_forward.1} parent=1 // pred_check
      _
    $region35: #{multihead_forward.1} parent=1 // pred_check_branch
      %2743 = sbr.rel (0) target = $region37
    $region36: #{multihead_forward.1} parent=1 // pred_region
      %s2745 = ssub.s32 256, 256
      %2746 = vsyncadd [#allocation4], %s2745
      %s2747 = sshll.u32 [#allocation8], 4
      %s2748 = int_to_ptr.vmem [resolvable:$true] %s2747
      %2753 = dma.vmem_to_hbm [thread:$0]  %s2748, 256, %s5, [#allocation4], 128, 128, 8
    $region37: #{multihead_forward.1} parent=1 // pred_fallthru
      _
    // Predicated region
    $region38: #{multihead_forward.1} parent=1 // pred_check
      _
    $region39: #{multihead_forward.1} parent=1 // pred_check_branch
      %2755 = sbr.rel (0) target = $region41
    $region40: #{multihead_forward.1} parent=1 // pred_region
      %s2757 = ssub.s32 256, 256
      %2758 = vsyncadd [#allocation10], %s2757
      %s2759 = sshll.u32 [#allocation9], 4
      %s2760 = int_to_ptr.vmem [resolvable:$true] %s2759
      %2765 = dma.vmem_to_hbm [thread:$0]  %s2760, 256, %s6, [#allocation10], 128, 128, 8
    $region41: #{multihead_forward.1} parent=1 // pred_fallthru
      _
    // Predicated region
    $region42: #{multihead_forward.1} parent=1 // pred_check
      _
    $region43: #{multihead_forward.1} parent=1 // pred_check_branch
      %2767 = sbr.rel (0) target = $region45
    $region44: #{multihead_forward.1} parent=1 // pred_region
      %2768 = dma.done [#allocation4], 256
    $region45: #{multihead_forward.1} parent=1 // pred_fallthru
      _
    // Predicated region
    $region46: #{multihead_forward.1} parent=1 // pred_check
      _
    $region47: #{multihead_forward.1} parent=1 // pred_check_branch
      %2770 = sbr.rel (0) target = $region49
    $region48: #{multihead_forward.1} parent=1 // pred_region
      %2771 = dma.done [#allocation10], 256
    $region49: #{multihead_forward.1} parent=1 // pred_fallthru
      _
    %2772 = vsyncpa [#allocation3], 1
    %2773 = vsyncpa [#allocation6], 1
    %2774 = vsyncpa [#allocation4], 1
    %2775 = vsyncpa [#allocation10], 1

</llo_original>
